<compile_context>
chip_gen: v7x
topology: tpu7x:2x2x1
jax: 0.10.0
libtpu: 0.0.40
codegen_flags: <defaults>
</compile_context>

<pallas_src>
import math

import jax
import jax.numpy as jnp
from jax import lax
from jax.experimental import pallas as pl
from jax.experimental.pallas import tpu as pltpu


def _round_up(x, m):
    return ((x + m - 1) // m) * m


# Safe on every generation (<= default scoped VMEM on v6e/v7x, a raise on v5e).
_VMEM_LIMIT = 32 * 1024 * 1024


# ----------------------------------------------------------------------------
# Kernel 1: fused FeedForward (Linear + ELU) for all four projections
# ----------------------------------------------------------------------------

def _fused_linear_elu_kernel(x_ref, w_ref, b_ref, o_ref):
    # x: [tm, D] bf16, w: [D, H] bf16, b: [1, H] f32 -> o: [tm, H] bf16
    y = jnp.dot(x_ref[...], w_ref[...], preferred_element_type=jnp.float32)
    y = y + b_ref[...]
    # ELU(alpha=1) in f32.  Clamp the argument so the discarded branch is finite.
    y = jnp.where(y > 0, y, jnp.exp(jnp.minimum(y, 0.0)) - 1.0)
    o_ref[...] = y.astype(o_ref.dtype)


def fused_linear_elu(x2d, w, b, tm_max=512):
    # tm_max: keep <=512 on v7x (64 MiB VMEM); can be raised to 1024-2048 on
    # v5e/v6e (128 MiB VMEM) to amortize the ~0.35us/step pipeline overhead.
    M, D = x2d.shape
    H = w.shape[1]
    tm = min(tm_max, _round_up(M, 8))
    M_pad = _round_up(M, tm)
    if M_pad != M:
        x2d = jnp.pad(x2d, ((0, M_pad - M), (0, 0)))
    out = pl.pallas_call(
        _fused_linear_elu_kernel,
        out_shape=jax.ShapeDtypeStruct((M_pad, H), jnp.bfloat16),
        grid=(M_pad // tm,),
        in_specs=[
            pl.BlockSpec((tm, D), lambda i: (i, 0)),
            # TODO(synk): pipeline_mode=pl.Buffered(1) on the grid-invariant
            # operands below would reclaim one double-buffer each on v7x.
            pl.BlockSpec((D, H), lambda i: (0, 0)),
            pl.BlockSpec((1, H), lambda i: (0, 0)),
        ],
        out_specs=pl.BlockSpec((tm, H), lambda i: (i, 0)),
        compiler_params=pltpu.CompilerParams(
            dimension_semantics=("parallel",),
            vmem_limit_bytes=_VMEM_LIMIT),
    )(x2d, w, b)
    return out[:M]


# ----------------------------------------------------------------------------
# Kernel 2: biaffine arc attention (input-bias column folded in algebraically)
# ----------------------------------------------------------------------------

def _arc_attention_kernel(hh_ref, hc_ref, waa_ref, whb_ref, wcb_ref, sc_ref,
                          o_ref):
    # [hh,1] @ W @ [hc,1]^T decomposed:
    #   hh @ W[:A,:A] @ hc^T  +  (hh . W[:A,A])  +  (W[A,:A] . hc)  +  W[A,A]+b
    hh = hh_ref[0]                                        # [row_tile, A_pad] bf16
    hc = hc_ref[0]                                        # [S1c_pad, A_pad] bf16
    tmp = jnp.dot(hh, waa_ref[...],
                  preferred_element_type=jnp.float32)     # [row_tile, A_pad]
    # Contract over hc's feature dim in-kernel (no host-side transpose / no
    # extra HBM pass); the transpose rides the MXU pipeline.
    scores = lax.dot_general(tmp.astype(jnp.bfloat16), hc,
                             (((1,), (1,)), ((), ())),
                             preferred_element_type=jnp.float32)  # [row_tile, S1c_pad]
    head_bias = jnp.dot(hh, whb_ref[...],
                        preferred_element_type=jnp.float32)       # [row_tile, 1]
    child_bias = lax.dot_general(wcb_ref[...], hc,
                                 (((1,), (1,)), ((), ())),
                                 preferred_element_type=jnp.float32)  # [1, S1c_pad]
    o_ref[0] = scores + head_bias + child_bias + sc_ref[0, 0]


def biaffine_arc_attention(head_arc, child_arc, w_aa, w_hb, w_cb, scalar,
                           row_tile):
    B, S1r_pad, A_pad = head_arc.shape
    S1c_pad = child_arc.shape[1]
    return pl.pallas_call(
        _arc_attention_kernel,
        out_shape=jax.ShapeDtypeStruct((B, S1r_pad, S1c_pad), jnp.float32),
        grid=(B, S1r_pad // row_tile),
        in_specs=[
            pl.BlockSpec((1, row_tile, A_pad), lambda b, r: (b, r, 0)),
            pl.BlockSpec((1, S1c_pad, A_pad), lambda b, r: (b, 0, 0)),
            pl.BlockSpec((A_pad, A_pad), lambda b, r: (0, 0)),
            pl.BlockSpec((A_pad, 1), lambda b, r: (0, 0)),
            pl.BlockSpec((1, A_pad), lambda b, r: (0, 0)),
            pl.BlockSpec(memory_space=pltpu.MemorySpace.SMEM),
        ],
        out_specs=pl.BlockSpec((1, row_tile, S1c_pad), lambda b, r: (b, r, 0)),
        compiler_params=pltpu.CompilerParams(
            dimension_semantics=("parallel", "parallel"),
            vmem_limit_bytes=_VMEM_LIMIT),
    )(head_arc, child_arc, w_aa, w_hb, w_cb, scalar)


# ----------------------------------------------------------------------------
# Kernel 3: fused bilinear-with-bias tag scorer (pred + gold selections)
# ----------------------------------------------------------------------------

def _tag_bilinear_kernel(x1_ref, x2_ref, w2d_ref, ut_ref, vt_ref, b_ref, o_ref):
    # out[sel, s, r] = x1[sel,s]^T W[r] x2[s] + U[r].x1[sel,s] + V[r].x2[s] + b[r]
    # w2d[u, t*R_pad + r] = W[r, t, u]: the child-side (x2) contraction runs
    # ONCE on the MXU and is shared by both head selections.
    x2 = x2_ref[0]                                        # [S1, T_pad] bf16
    q = jnp.dot(x2, w2d_ref[...],
                preferred_element_type=jnp.float32)       # [S1, T*R_pad]
    lin2 = jnp.dot(x2, vt_ref[...],
                   preferred_element_type=jnp.float32)    # [S1, R_pad]
    R_pad = b_ref.shape[1]
    T = q.shape[1] // R_pad
    for sel in range(2):              # 0: predicted-head, 1: gold-head
        x1 = x1_ref[0, sel]                               # [S1, T_pad] bf16
        x1f = x1.astype(jnp.float32)
        # T static, 128-aligned lane slices -> pure vreg selects + VPU FMAs.
        # TODO(synk): for large tag_dim chunk the t axis via a grid K-axis with
        # a pl.when-initialized accumulator to bound unroll / vreg pressure.
        bil = x1f[:, 0:1] * q[:, 0:R_pad]
        for t in range(1, T):
            bil = bil + x1f[:, t:t + 1] * q[:, t * R_pad:(t + 1) * R_pad]
        lin1 = jnp.dot(x1, ut_ref[...], preferred_element_type=jnp.float32)
        o_ref[0, sel] = bil + lin1 + lin2 + b_ref[...]


def tag_bilinear_fused(x1_stacked, x2, w2d, ut, vt, b):
    # x1_stacked: [B, 2, S1, T_pad] (pred/gold selections share one x2 load and
    # one resident set of weights per grid step).
    B, _, S1, T_pad = x1_stacked.shape
    R_pad = b.shape[1]
    return pl.pallas_call(
        _tag_bilinear_kernel,
        out_shape=jax.ShapeDtypeStruct((B, 2, S1, R_pad), jnp.float32),
        grid=(B,),
        in_specs=[
            pl.BlockSpec((1, 2, S1, T_pad), lambda i: (i, 0, 0, 0)),
            pl.BlockSpec((1, S1, T_pad), lambda i: (i, 0, 0)),
            pl.BlockSpec((T_pad, w2d.shape[1]), lambda i: (0, 0)),
            pl.BlockSpec((T_pad, R_pad), lambda i: (0, 0)),
            pl.BlockSpec((T_pad, R_pad), lambda i: (0, 0)),
            pl.BlockSpec((1, R_pad), lambda i: (0, 0)),
        ],
        out_specs=pl.BlockSpec((1, 2, S1, R_pad), lambda i: (i, 0, 0, 0)),
        compiler_params=pltpu.CompilerParams(
            dimension_semantics=("parallel",),
            vmem_limit_bytes=_VMEM_LIMIT),
    )(x1_stacked, x2, w2d, ut, vt, b)


# ----------------------------------------------------------------------------
# Forward pass (eval mode: dropouts are identity, greedy decoding)
# ----------------------------------------------------------------------------

def biaffine_parser_forward(params, context_encoded, lengths, head_indices, head_tags):
    B, S, D = context_encoded.shape
    S1 = S + 1
    A = params['w_head_arc'].shape[1]
    T = params['w_head_tag'].shape[1]
    R = params['tag_w'].shape[0]
    A_pad = _round_up(A, 128)
    T_pad = _round_up(T, 128)
    R_pad = _round_up(R, 128)

    # mask from sequence lengths
    mask = (jnp.arange(S)[None, :] < lengths[:, None]).astype(jnp.int32)        # [B, S]

    # prepend head sentinel
    sentinel = jnp.broadcast_to(params['head_sentinel'], (B, 1, D))
    x = jnp.concatenate([sentinel, context_encoded], axis=1)                    # [B, S1, D]
    mask = jnp.concatenate([jnp.ones((B, 1), jnp.int32), mask], axis=1)         # [B, S1]
    head_indices = jnp.concatenate([jnp.zeros((B, 1), jnp.int32), head_indices], axis=1)
    head_tags = jnp.concatenate([jnp.zeros((B, 1), jnp.int32), head_tags], axis=1)
    float_mask = mask.astype(jnp.float32)

    # ------- fused FeedForward projections (one tiled bf16 Pallas matmul) -------
    # Each segment is padded to a 128-lane multiple independently so all the
    # downstream slices are at 128-aligned offsets with 128-multiple widths.
    def pad_cols(a, width):
        return jnp.pad(a, ((0, 0), (0, width - a.shape[1])))

    w_fused = jnp.concatenate(
        [pad_cols(params['w_head_arc'], A_pad), pad_cols(params['w_child_arc'], A_pad),
         pad_cols(params['w_head_tag'], T_pad), pad_cols(params['w_child_tag'], T_pad)],
        axis=1)
    b_fused = jnp.concatenate(
        [pad_cols(params['b_head_arc'], A_pad), pad_cols(params['b_child_arc'], A_pad),
         pad_cols(params['b_head_tag'], T_pad), pad_cols(params['b_child_tag'], T_pad)],
        axis=1)

    proj = fused_linear_elu(x.reshape(B * S1, D).astype(jnp.bfloat16),
                            w_fused.astype(jnp.bfloat16),
                            b_fused.astype(jnp.float32))           # [B*S1, 2A_pad+2T_pad] bf16
    o0, o1, o2, o3 = 0, A_pad, 2 * A_pad, 2 * A_pad + T_pad
    head_arc = proj[:, o0:o0 + A_pad].reshape(B, S1, A_pad)
    child_arc = proj[:, o1:o1 + A_pad].reshape(B, S1, A_pad)
    head_tag_rep = proj[:, o2:o2 + T_pad].reshape(B, S1, T_pad)
    child_tag_rep = proj[:, o3:o3 + T_pad].reshape(B, S1, T_pad)
    # Padded lanes carry ELU(0) = 0, so zero-padded weights below stay exact.

    # ------- biaffine arc attention (use_input_biases folded in, bf16 MXU) -------
    row_tile = min(128, _round_up(S1, 8))
    S1r_pad = _round_up(S1, row_tile)            # dependent/row axis (sublane)
    S1c_pad = _round_up(S1, 128)                 # head/column axis (lane-dense)
    head_arc_p = jnp.pad(head_arc, ((0, 0), (0, S1r_pad - S1), (0, 0)))
    child_arc_p = jnp.pad(child_arc, ((0, 0), (0, S1c_pad - S1), (0, 0)))
    arc_w = params['arc_w']
    w_aa = jnp.pad(arc_w[:A, :A], ((0, A_pad - A), (0, A_pad - A))).astype(jnp.bfloat16)
    w_hb = jnp.pad(arc_w[:A, A].reshape(A, 1), ((0, A_pad - A), (0, 0))).astype(jnp.bfloat16)
    w_cb = jnp.pad(arc_w[A, :A].reshape(1, A), ((0, 0), (0, A_pad - A))).astype(jnp.bfloat16)
    scalar = (arc_w[A, A] + params['arc_b'][0, 0]).reshape(1, 1).astype(jnp.float32)
    attended_full = biaffine_arc_attention(head_arc_p, child_arc_p, w_aa, w_hb,
                                           w_cb, scalar, row_tile)   # [B,S1r_pad,S1c_pad] f32
    attended_arcs = attended_full[:, :S1, :]                         # [B, S1, S1c_pad]

    # ---------------- greedy decode ----------------
    neg_inf = jnp.float32(-jnp.inf)
    rows = jnp.arange(S1)[:, None]
    cols = jnp.arange(S1c_pad)[None, :]
    # diag -inf (as in the reference) + the padded head columns MUST be masked
    # so lane padding can never be selected as a head.
    decode_mask = jnp.where((rows == cols) | (cols >= S1), neg_inf, jnp.float32(0.0))
    arcs_dec = attended_arcs + decode_mask[None]
    arcs_dec = jnp.where(mask[:, :, None] == 0, neg_inf, arcs_dec)
    predicted_heads = jnp.argmax(arcs_dec, axis=2).astype(jnp.int32)            # [B, S1]

    # ------- fused tag scorer for predicted- and gold-head selections -------
    # w2d[u, t*R_pad + r] = W[r, t, u] (u is the contraction dim, padded to T_pad)
    w_p = jnp.pad(params['tag_w'], ((0, R_pad - R), (0, 0), (0, T_pad - T)))    # [R_pad,T,T_pad]
    w2d = jnp.transpose(w_p, (2, 1, 0)).reshape(T_pad, T * R_pad).astype(jnp.bfloat16)
    ut = jnp.pad(params['tag_u_t'], ((0, T_pad - T), (0, R_pad - R))).astype(jnp.bfloat16)
    vt = jnp.pad(params['tag_v_t'], ((0, T_pad - T), (0, R_pad - R))).astype(jnp.bfloat16)
    # Padded relation slots get a huge negative bias: they never win an argmax
    # and vanish from the log-softmax, so the output stays R_pad lane-dense.
    tag_b = jnp.pad(params['tag_b'], ((0, 0), (0, R_pad - R)),
                    constant_values=-1e9).astype(jnp.float32)

    sel_pred = jnp.take_along_axis(head_tag_rep, predicted_heads[:, :, None], axis=1)
    sel_gold = jnp.take_along_axis(head_tag_rep, head_indices[:, :, None], axis=1)
    x1_stacked = jnp.stack([sel_pred, sel_gold], axis=1)                        # [B,2,S1,T_pad]
    tag_logits = tag_bilinear_fused(x1_stacked, child_tag_rep, w2d, ut, vt, tag_b)
    pred_tag_logits = tag_logits[:, 0]                                          # [B,S1,R_pad]
    head_tag_logits = tag_logits[:, 1]
    predicted_head_tags = jnp.argmax(pred_tag_logits, axis=2).astype(jnp.int32)

    # ---------------- loss (gold heads / tags), f32 ----------------
    minus_inf = jnp.float32(-1e8)
    col_float_mask = jnp.pad(float_mask, ((0, 0), (0, S1c_pad - S1)))   # 0 on padded cols
    minus_mask_rows = (1.0 - float_mask) * minus_inf
    minus_mask_cols = (1.0 - col_float_mask) * minus_inf
    arcs_loss = attended_arcs + minus_mask_rows[:, :, None] + minus_mask_cols[:, None, :]
    # masked_log_softmax over the head (last) dim: log(mask + 1e-45) added first
    logmask = jnp.where(col_float_mask > 0.5, jnp.float32(0.0),
                        jnp.float32(math.log(1e-45)))[:, None, :]
    normalised_arc_logits = jax.nn.log_softmax(arcs_loss + logmask, axis=-1)
    normalised_arc_logits = (normalised_arc_logits
                             * float_mask[:, :, None] * col_float_mask[:, None, :])

    normalised_tag_logits = jax.nn.log_softmax(head_tag_logits, axis=-1) * float_mask[:, :, None]

    arc_loss = jnp.take_along_axis(normalised_arc_logits, head_indices[:, :, None], axis=2)[:, :, 0]
    tag_loss = jnp.take_along_axis(normalised_tag_logits, head_tags[:, :, None], axis=2)[:, :, 0]
    arc_loss = arc_loss[:, 1:]
    tag_loss = tag_loss[:, 1:]
    valid_positions = (jnp.sum(mask) - B).astype(jnp.float32)
    arc_nll = -jnp.sum(arc_loss) / valid_positions
    tag_nll = -jnp.sum(tag_loss) / valid_positions
    loss = arc_nll + tag_nll

    return {'heads': predicted_heads, 'head_tags': predicted_head_tags,
            'arc_loss': arc_nll, 'tag_loss': tag_nll, 'loss': loss, 'mask': mask}


# ----------------------------------------------------------------------------
# Deterministic parameter setup + example run
# ----------------------------------------------------------------------------

def make_params(key, encoder_dim, arc_dim, tag_dim, n_relations):
    ks = jax.random.split(key, 16)

    def nrm(k, shape, scale=0.1):
        return (scale * jax.random.normal(k, shape)).astype(jnp.float32)

    return {
        'head_sentinel': nrm(ks[0], (1, 1, encoder_dim), 1.0),
        # FeedForward(encoder_dim -> arc/tag dim) weights (ELU activation)
        'w_head_arc': nrm(ks[1], (encoder_dim, arc_dim)),
        'b_head_arc': jnp.zeros((1, arc_dim), jnp.float32),
        'w_child_arc': nrm(ks[2], (encoder_dim, arc_dim)),
        'b_child_arc': jnp.zeros((1, arc_dim), jnp.float32),
        'w_head_tag': nrm(ks[3], (encoder_dim, tag_dim)),
        'b_head_tag': jnp.zeros((1, tag_dim), jnp.float32),
        'w_child_tag': nrm(ks[4], (encoder_dim, tag_dim)),
        'b_child_tag': jnp.zeros((1, tag_dim), jnp.float32),
        # BilinearMatrixAttention (use_input_biases=True): (arc_dim+1, arc_dim+1) + scalar bias
        'arc_w': nrm(ks[5], (arc_dim + 1, arc_dim + 1)),
        'arc_b': nrm(ks[6], (1, 1)),
        # BilinearWithBias(tag_dim, tag_dim, n_relations)
        'tag_w': nrm(ks[7], (n_relations, tag_dim, tag_dim)),
        'tag_u_t': nrm(ks[8], (tag_dim, n_relations)),
        'tag_v_t': nrm(ks[9], (tag_dim, n_relations)),
        'tag_b': nrm(ks[10], (1, n_relations)),
    }


if __name__ == "__main__":
    B, S, D = 2, 8, 32            # batch, seq (before sentinel), encoder dim
    arc_dim, tag_dim, n_rel = 16, 8, 8

    key = jax.random.PRNGKey(0)
    kp, kx, ki, kt = jax.random.split(key, 4)

    params = make_params(kp, D, arc_dim, tag_dim, n_rel)

    # "context_encoded_input": stands in for the (unimplemented) LSTM context encoder output
    context = jax.random.normal(kx, (B, S, D), jnp.float32)
    lengths = jnp.array([8, 5], jnp.int32)
    head_indices = jax.random.randint(ki, (B, S), 0, S + 1).astype(jnp.int32)   # heads in [0, S]
    head_tags = jax.random.randint(kt, (B, S), 0, n_rel).astype(jnp.int32)

    fwd = jax.jit(biaffine_parser_forward)
    out = fwd(params, context, lengths, head_indices, head_tags)
    out = jax.block_until_ready(out)

    assert out['heads'].shape == (B, S + 1)
    assert out['head_tags'].shape == (B, S + 1)
    assert bool(jnp.isfinite(out['loss']))
    print("KERNEL_OK")
</pallas_src>

<mosaic_0001>
module attributes {stable_mosaic.version = 11 : i64} {
  func.func @_fused_linear_elu_kernel(%arg0: i32, %arg1: memref<24x32xbf16, #tpu.memory_space<vmem>>, %arg2: memref<32x512xbf16, #tpu.memory_space<vmem>>, %arg3: memref<1x512xf32, #tpu.memory_space<vmem>>, %arg4: memref<24x512xbf16, #tpu.memory_space<vmem>>) attributes {dimension_semantics = [#tpu.dimension_semantics<parallel>], iteration_bounds = array<i64: 1>, scalar_prefetch = 0 : i64, scratch_operands = 0 : i64, tpu.core_type = #tpu.core_type<tc>, window_params = [{transform_indices = @transform_0, window_bounds = array<i64: 24, 32>}, {pipeline_mode = #tpu.pipeline_mode<synchronous>, transform_indices = @transform_1, window_bounds = array<i64: 32, 512>}, {pipeline_mode = #tpu.pipeline_mode<synchronous>, transform_indices = @transform_2, window_bounds = array<i64: 1, 512>}, {transform_indices = @transform_3, window_bounds = array<i64: 24, 512>}]} {
    %c0 = arith.constant 0 : index
    %c0_0 = arith.constant 0 : index
    %0 = vector.load %arg1[%c0, %c0_0] : memref<24x32xbf16, #tpu.memory_space<vmem>>, vector<24x32xbf16>
    %c0_1 = arith.constant 0 : index
    %c0_2 = arith.constant 0 : index
    %1 = vector.load %arg2[%c0_1, %c0_2] : memref<32x512xbf16, #tpu.memory_space<vmem>>, vector<32x512xbf16>
    %cst = arith.constant dense<0.000000e+00> : vector<24x512xf32>
    %2 = tpu.matmul %0, %1, %cst {dimension_numbers = #tpu.dot_dimension_numbers<[1], [0], [0], [1], [0, 0, 1, 1], [], []>} : vector<24x32xbf16>, vector<32x512xbf16>, vector<24x512xf32> -> vector<24x512xf32>
    %c0_3 = arith.constant 0 : index
    %c0_4 = arith.constant 0 : index
    %3 = vector.load %arg3[%c0_3, %c0_4] : memref<1x512xf32, #tpu.memory_space<vmem>>, vector<1x512xf32>
    %4 = vector.broadcast %3 : vector<1x512xf32> to vector<24x512xf32>
    %5 = arith.addf %2, %4 : vector<24x512xf32>
    %cst_5 = arith.constant 0.000000e+00 : f32
    %6 = vector.broadcast %cst_5 : f32 to vector<24x512xf32>
    %7 = arith.cmpf ogt, %5, %6 : vector<24x512xf32>
    %cst_6 = arith.constant 0.000000e+00 : f32
    %8 = vector.broadcast %cst_6 : f32 to vector<24x512xf32>
    %9 = arith.minimumf %5, %8 : vector<24x512xf32>
    %10 = math.exp %9 : vector<24x512xf32>
    %cst_7 = arith.constant 1.000000e+00 : f32
    %11 = vector.broadcast %cst_7 : f32 to vector<24x512xf32>
    %12 = arith.subf %10, %11 : vector<24x512xf32>
    %13 = arith.select %7, %5, %12 : vector<24x512xi1>, vector<24x512xf32>
    %14 = arith.truncf %13 : vector<24x512xf32> to vector<24x512xbf16>
    %c0_8 = arith.constant 0 : index
    %c0_9 = arith.constant 0 : index
    %15 = vector.load %arg4[%c0_8, %c0_9] : memref<24x512xbf16, #tpu.memory_space<vmem>>, vector<24x512xbf16>
    tpu.vector_store %arg4[%c0_8, %c0_9], %14 {strides = array<i32>} : memref<24x512xbf16, #tpu.memory_space<vmem>>, vector<24x512xbf16>,
    return
  }
  func.func @transform_0(%arg0: i32) -> (i32, i32) {
    %c0_i32 = arith.constant 0 : i32
    %c0_i32_0 = arith.constant 0 : i32
    return %arg0, %c0_i32 : i32, i32
  }
  func.func @transform_1(%arg0: i32) -> (i32, i32) {
    %c0_i32 = arith.constant 0 : i32
    %c0_i32_0 = arith.constant 0 : i32
    %c0_i32_1 = arith.constant 0 : i32
    return %c0_i32, %c0_i32_0 : i32, i32
  }
  func.func @transform_2(%arg0: i32) -> (i32, i32) {
    %c0_i32 = arith.constant 0 : i32
    %c0_i32_0 = arith.constant 0 : i32
    %c0_i32_1 = arith.constant 0 : i32
    return %c0_i32, %c0_i32_0 : i32, i32
  }
  func.func @transform_3(%arg0: i32) -> (i32, i32) {
    %c0_i32 = arith.constant 0 : i32
    %c0_i32_0 = arith.constant 0 : i32
    return %arg0, %c0_i32 : i32, i32
  }
}

module attributes {stable_mosaic.version = 11 : i64} {
  func.func @_arc_attention_kernel(%arg0: i32, %arg1: i32, %arg2: memref<1x16x128xbf16, #tpu.memory_space<vmem>>, %arg3: memref<1x128x128xbf16, #tpu.memory_space<vmem>>, %arg4: memref<128x128xbf16, #tpu.memory_space<vmem>>, %arg5: memref<128x1xbf16, #tpu.memory_space<vmem>>, %arg6: memref<1x128xbf16, #tpu.memory_space<vmem>>, %arg7: memref<1x1xf32, #tpu.memory_space<smem>>, %arg8: memref<1x16x128xf32, #tpu.memory_space<vmem>>) attributes {dimension_semantics = [#tpu.dimension_semantics<parallel>, #tpu.dimension_semantics<parallel>], iteration_bounds = array<i64: 2, 1>, scalar_prefetch = 0 : i64, scratch_operands = 0 : i64, tpu.core_type = #tpu.core_type<tc>, window_params = [{transform_indices = @transform_0, window_bounds = array<i64: 1, 16, 128>}, {transform_indices = @transform_1, window_bounds = array<i64: 1, 128, 128>}, {pipeline_mode = #tpu.pipeline_mode<synchronous>, transform_indices = @transform_2, window_bounds = array<i64: 128, 128>}, {pipeline_mode = #tpu.pipeline_mode<synchronous>, transform_indices = @transform_3, window_bounds = array<i64: 128, 1>}, {pipeline_mode = #tpu.pipeline_mode<synchronous>, transform_indices = @transform_4, window_bounds = array<i64: 1, 128>}, {transform_indices = @transform_5, window_bounds = array<i64: 1, 1>}, {transform_indices = @transform_6, window_bounds = array<i64: 1, 16, 128>}]} {
    %c0 = arith.constant 0 : index
    %c0_0 = arith.constant 0 : index
    %c0_1 = arith.constant 0 : index
    %0 = vector.load %arg2[%c0, %c0_0, %c0_1] : memref<1x16x128xbf16, #tpu.memory_space<vmem>>, vector<1x16x128xbf16>
    %1 = vector.shape_cast %0 : vector<1x16x128xbf16> to vector<16x128xbf16>
    %c0_2 = arith.constant 0 : index
    %c0_3 = arith.constant 0 : index
    %c0_4 = arith.constant 0 : index
    %2 = vector.load %arg3[%c0_2, %c0_3, %c0_4] : memref<1x128x128xbf16, #tpu.memory_space<vmem>>, vector<1x128x128xbf16>
    %3 = vector.shape_cast %2 : vector<1x128x128xbf16> to vector<128x128xbf16>
    %c0_5 = arith.constant 0 : index
    %c0_6 = arith.constant 0 : index
    %4 = vector.load %arg4[%c0_5, %c0_6] : memref<128x128xbf16, #tpu.memory_space<vmem>>, vector<128x128xbf16>
    %cst = arith.constant dense<0.000000e+00> : vector<16x128xf32>
    %5 = tpu.matmul %1, %4, %cst {dimension_numbers = #tpu.dot_dimension_numbers<[1], [0], [0], [1], [0, 0, 1, 1], [], []>} : vector<16x128xbf16>, vector<128x128xbf16>, vector<16x128xf32> -> vector<16x128xf32>
    %6 = arith.truncf %5 : vector<16x128xf32> to vector<16x128xbf16>
    %cst_7 = arith.constant dense<0.000000e+00> : vector<16x128xf32>
    %7 = tpu.matmul %6, %3, %cst_7 {dimension_numbers = #tpu.dot_dimension_numbers<[1], [1], [0], [0], [0, 0, 1, 0], [], []>} : vector<16x128xbf16>, vector<128x128xbf16>, vector<16x128xf32> -> vector<16x128xf32>
    %c0_8 = arith.constant 0 : index
    %c0_9 = arith.constant 0 : index
    %8 = vector.load %arg5[%c0_8, %c0_9] : memref<128x1xbf16, #tpu.memory_space<vmem>>, vector<128x1xbf16>
    %cst_10 = arith.constant dense<0.000000e+00> : vector<16x1xf32>
    %9 = tpu.matmul %1, %8, %cst_10 {dimension_numbers = #tpu.dot_dimension_numbers<[1], [0], [0], [1], [0, 0, 1, 1], [], []>} : vector<16x128xbf16>, vector<128x1xbf16>, vector<16x1xf32> -> vector<16x1xf32>
    %c0_11 = arith.constant 0 : index
    %c0_12 = arith.constant 0 : index
    %10 = vector.load %arg6[%c0_11, %c0_12] : memref<1x128xbf16, #tpu.memory_space<vmem>>, vector<1x128xbf16>
    %cst_13 = arith.constant dense<0.000000e+00> : vector<1x128xf32>
    %11 = tpu.matmul %10, %3, %cst_13 {dimension_numbers = #tpu.dot_dimension_numbers<[1], [1], [0], [0], [0, 0, 1, 0], [], []>} : vector<1x128xbf16>, vector<128x128xbf16>, vector<1x128xf32> -> vector<1x128xf32>
    %12 = vector.broadcast %9 : vector<16x1xf32> to vector<16x128xf32>
    %13 = arith.addf %7, %12 : vector<16x128xf32>
    %14 = vector.broadcast %11 : vector<1x128xf32> to vector<16x128xf32>
    %15 = arith.addf %13, %14 : vector<16x128xf32>
    %c0_14 = arith.constant 0 : index
    %c0_15 = arith.constant 0 : index
    %16 = memref.load %arg7[%c0_14, %c0_15] : memref<1x1xf32, #tpu.memory_space<smem>>
    %17 = vector.broadcast %16 : f32 to vector<16x128xf32>
    %18 = arith.addf %15, %17 : vector<16x128xf32>
    %c0_16 = arith.constant 0 : index
    %c0_17 = arith.constant 0 : index
    %c0_18 = arith.constant 0 : index
    %19 = vector.load %arg8[%c0_16, %c0_17, %c0_18] : memref<1x16x128xf32, #tpu.memory_space<vmem>>, vector<1x16x128xf32>
    %20 = vector.shape_cast %19 : vector<1x16x128xf32> to vector<16x128xf32>
    %21 = vector.shape_cast %18 : vector<16x128xf32> to vector<1x16x128xf32>
    tpu.vector_store %arg8[%c0_16, %c0_17, %c0_18], %21 {strides = array<i32>} : memref<1x16x128xf32, #tpu.memory_space<vmem>>, vector<1x16x128xf32>,
    return
  }
  func.func @transform_0(%arg0: i32, %arg1: i32) -> (i32, i32, i32) {
    %c0_i32 = arith.constant 0 : i32
    %c0_i32_0 = arith.constant 0 : i32
    return %arg0, %arg1, %c0_i32 : i32, i32, i32
  }
  func.func @transform_1(%arg0: i32, %arg1: i32) -> (i32, i32, i32) {
    %c0_i32 = arith.constant 0 : i32
    %c0_i32_0 = arith.constant 0 : i32
    %c0_i32_1 = arith.constant 0 : i32
    return %arg0, %c0_i32, %c0_i32_0 : i32, i32, i32
  }
  func.func @transform_2(%arg0: i32, %arg1: i32) -> (i32, i32) {
    %c0_i32 = arith.constant 0 : i32
    %c0_i32_0 = arith.constant 0 : i32
    %c0_i32_1 = arith.constant 0 : i32
    return %c0_i32, %c0_i32_0 : i32, i32
  }
  func.func @transform_3(%arg0: i32, %arg1: i32) -> (i32, i32) {
    %c0_i32 = arith.constant 0 : i32
    %c0_i32_0 = arith.constant 0 : i32
    %c0_i32_1 = arith.constant 0 : i32
    return %c0_i32, %c0_i32_0 : i32, i32
  }
  func.func @transform_4(%arg0: i32, %arg1: i32) -> (i32, i32) {
    %c0_i32 = arith.constant 0 : i32
    %c0_i32_0 = arith.constant 0 : i32
    %c0_i32_1 = arith.constant 0 : i32
    return %c0_i32, %c0_i32_0 : i32, i32
  }
  func.func @transform_5(%arg0: i32, %arg1: i32) -> (i32, i32) {
    %c0_i32 = arith.constant 0 : i32
    %c0_i32_0 = arith.constant 0 : i32
    %c0_i32_1 = arith.constant 0 : i32
    return %c0_i32, %c0_i32_0 : i32, i32
  }
  func.func @transform_6(%arg0: i32, %arg1: i32) -> (i32, i32, i32) {
    %c0_i32 = arith.constant 0 : i32
    %c0_i32_0 = arith.constant 0 : i32
    return %arg0, %arg1, %c0_i32 : i32, i32, i32
  }
}

module attributes {stable_mosaic.version = 11 : i64} {
  func.func @_tag_bilinear_kernel(%arg0: i32, %arg1: memref<1x2x9x128xbf16, #tpu.memory_space<vmem>>, %arg2: memref<1x9x128xbf16, #tpu.memory_space<vmem>>, %arg3: memref<128x1024xbf16, #tpu.memory_space<vmem>>, %arg4: memref<128x128xbf16, #tpu.memory_space<vmem>>, %arg5: memref<128x128xbf16, #tpu.memory_space<vmem>>, %arg6: memref<1x128xf32, #tpu.memory_space<vmem>>, %arg7: memref<1x2x9x128xf32, #tpu.memory_space<vmem>>) attributes {dimension_semantics = [#tpu.dimension_semantics<parallel>], iteration_bounds = array<i64: 2>, scalar_prefetch = 0 : i64, scratch_operands = 0 : i64, tpu.core_type = #tpu.core_type<tc>, window_params = [{transform_indices = @transform_0, window_bounds = array<i64: 1, 2, 9, 128>}, {transform_indices = @transform_1, window_bounds = array<i64: 1, 9, 128>}, {pipeline_mode = #tpu.pipeline_mode<synchronous>, transform_indices = @transform_2, window_bounds = array<i64: 128, 1024>}, {pipeline_mode = #tpu.pipeline_mode<synchronous>, transform_indices = @transform_3, window_bounds = array<i64: 128, 128>}, {pipeline_mode = #tpu.pipeline_mode<synchronous>, transform_indices = @transform_4, window_bounds = array<i64: 128, 128>}, {pipeline_mode = #tpu.pipeline_mode<synchronous>, transform_indices = @transform_5, window_bounds = array<i64: 1, 128>}, {transform_indices = @transform_6, window_bounds = array<i64: 1, 2, 9, 128>}]} {
    %c0 = arith.constant 0 : index
    %c0_0 = arith.constant 0 : index
    %c0_1 = arith.constant 0 : index
    %0 = vector.load %arg2[%c0, %c0_0, %c0_1] : memref<1x9x128xbf16, #tpu.memory_space<vmem>>, vector<1x9x128xbf16>
    %1 = vector.shape_cast %0 : vector<1x9x128xbf16> to vector<9x128xbf16>
    %c0_2 = arith.constant 0 : index
    %c0_3 = arith.constant 0 : index
    %2 = vector.load %arg3[%c0_2, %c0_3] : memref<128x1024xbf16, #tpu.memory_space<vmem>>, vector<128x1024xbf16>
    %cst = arith.constant dense<0.000000e+00> : vector<9x1024xf32>
    %3 = tpu.matmul %1, %2, %cst {dimension_numbers = #tpu.dot_dimension_numbers<[1], [0], [0], [1], [0, 0, 1, 1], [], []>} : vector<9x128xbf16>, vector<128x1024xbf16>, vector<9x1024xf32> -> vector<9x1024xf32>
    %c0_4 = arith.constant 0 : index
    %c0_5 = arith.constant 0 : index
    %4 = vector.load %arg5[%c0_4, %c0_5] : memref<128x128xbf16, #tpu.memory_space<vmem>>, vector<128x128xbf16>
    %cst_6 = arith.constant dense<0.000000e+00> : vector<9x128xf32>
    %5 = tpu.matmul %1, %4, %cst_6 {dimension_numbers = #tpu.dot_dimension_numbers<[1], [0], [0], [1], [0, 0, 1, 1], [], []>} : vector<9x128xbf16>, vector<128x128xbf16>, vector<9x128xf32> -> vector<9x128xf32>
    %c0_7 = arith.constant 0 : index
    %c0_8 = arith.constant 0 : index
    %c0_9 = arith.constant 0 : index
    %c0_10 = arith.constant 0 : index
    %6 = vector.load %arg1[%c0_7, %c0_8, %c0_9, %c0_10] : memref<1x2x9x128xbf16, #tpu.memory_space<vmem>>, vector<1x1x9x128xbf16>
    %7 = vector.shape_cast %6 : vector<1x1x9x128xbf16> to vector<9x128xbf16>
    %8 = arith.extf %7 : vector<9x128xbf16> to vector<9x128xf32>
    %9 = vector.extract_strided_slice %8 {offsets = [0, 0], sizes = [9, 1], strides = [1, 1]} : vector<9x128xf32> to vector<9x1xf32>
    %10 = vector.extract_strided_slice %3 {offsets = [0, 0], sizes = [9, 128], strides = [1, 1]} : vector<9x1024xf32> to vector<9x128xf32>
    %11 = vector.broadcast %9 : vector<9x1xf32> to vector<9x128xf32>
    %12 = arith.mulf %11, %10 : vector<9x128xf32>
    %13 = vector.extract_strided_slice %8 {offsets = [0, 1], sizes = [9, 1], strides = [1, 1]} : vector<9x128xf32> to vector<9x1xf32>
    %14 = vector.extract_strided_slice %3 {offsets = [0, 128], sizes = [9, 128], strides = [1, 1]} : vector<9x1024xf32> to vector<9x128xf32>
    %15 = vector.broadcast %13 : vector<9x1xf32> to vector<9x128xf32>
    %16 = arith.mulf %15, %14 : vector<9x128xf32>
    %17 = arith.addf %12, %16 : vector<9x128xf32>
    %18 = vector.extract_strided_slice %8 {offsets = [0, 2], sizes = [9, 1], strides = [1, 1]} : vector<9x128xf32> to vector<9x1xf32>
    %19 = vector.extract_strided_slice %3 {offsets = [0, 256], sizes = [9, 128], strides = [1, 1]} : vector<9x1024xf32> to vector<9x128xf32>
    %20 = vector.broadcast %18 : vector<9x1xf32> to vector<9x128xf32>
    %21 = arith.mulf %20, %19 : vector<9x128xf32>
    %22 = arith.addf %17, %21 : vector<9x128xf32>
    %23 = vector.extract_strided_slice %8 {offsets = [0, 3], sizes = [9, 1], strides = [1, 1]} : vector<9x128xf32> to vector<9x1xf32>
    %24 = vector.extract_strided_slice %3 {offsets = [0, 384], sizes = [9, 128], strides = [1, 1]} : vector<9x1024xf32> to vector<9x128xf32>
    %25 = vector.broadcast %23 : vector<9x1xf32> to vector<9x128xf32>
    %26 = arith.mulf %25, %24 : vector<9x128xf32>
    %27 = arith.addf %22, %26 : vector<9x128xf32>
    %28 = vector.extract_strided_slice %8 {offsets = [0, 4], sizes = [9, 1], strides = [1, 1]} : vector<9x128xf32> to vector<9x1xf32>
    %29 = vector.extract_strided_slice %3 {offsets = [0, 512], sizes = [9, 128], strides = [1, 1]} : vector<9x1024xf32> to vector<9x128xf32>
    %30 = vector.broadcast %28 : vector<9x1xf32> to vector<9x128xf32>
    %31 = arith.mulf %30, %29 : vector<9x128xf32>
    %32 = arith.addf %27, %31 : vector<9x128xf32>
    %33 = vector.extract_strided_slice %8 {offsets = [0, 5], sizes = [9, 1], strides = [1, 1]} : vector<9x128xf32> to vector<9x1xf32>
    %34 = vector.extract_strided_slice %3 {offsets = [0, 640], sizes = [9, 128], strides = [1, 1]} : vector<9x1024xf32> to vector<9x128xf32>
    %35 = vector.broadcast %33 : vector<9x1xf32> to vector<9x128xf32>
    %36 = arith.mulf %35, %34 : vector<9x128xf32>
    %37 = arith.addf %32, %36 : vector<9x128xf32>
    %38 = vector.extract_strided_slice %8 {offsets = [0, 6], sizes = [9, 1], strides = [1, 1]} : vector<9x128xf32> to vector<9x1xf32>
    %39 = vector.extract_strided_slice %3 {offsets = [0, 768], sizes = [9, 128], strides = [1, 1]} : vector<9x1024xf32> to vector<9x128xf32>
    %40 = vector.broadcast %38 : vector<9x1xf32> to vector<9x128xf32>
    %41 = arith.mulf %40, %39 : vector<9x128xf32>
    %42 = arith.addf %37, %41 : vector<9x128xf32>
    %43 = vector.extract_strided_slice %8 {offsets = [0, 7], sizes = [9, 1], strides = [1, 1]} : vector<9x128xf32> to vector<9x1xf32>
    %44 = vector.extract_strided_slice %3 {offsets = [0, 896], sizes = [9, 128], strides = [1, 1]} : vector<9x1024xf32> to vector<9x128xf32>
    %45 = vector.broadcast %43 : vector<9x1xf32> to vector<9x128xf32>
    %46 = arith.mulf %45, %44 : vector<9x128xf32>
    %47 = arith.addf %42, %46 : vector<9x128xf32>
    %c0_11 = arith.constant 0 : index
    %c0_12 = arith.constant 0 : index
    %48 = vector.load %arg4[%c0_11, %c0_12] : memref<128x128xbf16, #tpu.memory_space<vmem>>, vector<128x128xbf16>
    %cst_13 = arith.constant dense<0.000000e+00> : vector<9x128xf32>
    %49 = tpu.matmul %7, %48, %cst_13 {dimension_numbers = #tpu.dot_dimension_numbers<[1], [0], [0], [1], [0, 0, 1, 1], [], []>} : vector<9x128xbf16>, vector<128x128xbf16>, vector<9x128xf32> -> vector<9x128xf32>
    %50 = arith.addf %47, %49 : vector<9x128xf32>
    %51 = arith.addf %50, %5 : vector<9x128xf32>
    %c0_14 = arith.constant 0 : index
    %c0_15 = arith.constant 0 : index
    %52 = vector.load %arg6[%c0_14, %c0_15] : memref<1x128xf32, #tpu.memory_space<vmem>>, vector<1x128xf32>
    %53 = vector.broadcast %52 : vector<1x128xf32> to vector<9x128xf32>
    %54 = arith.addf %51, %53 : vector<9x128xf32>
    %c0_16 = arith.constant 0 : index
    %c0_17 = arith.constant 0 : index
    %c0_18 = arith.constant 0 : index
    %c0_19 = arith.constant 0 : index
    %55 = vector.load %arg7[%c0_16, %c0_17, %c0_18, %c0_19] : memref<1x2x9x128xf32, #tpu.memory_space<vmem>>, vector<1x1x9x128xf32>
    %56 = vector.shape_cast %55 : vector<1x1x9x128xf32> to vector<9x128xf32>
    %57 = vector.shape_cast %54 : vector<9x128xf32> to vector<1x1x9x128xf32>
    tpu.vector_store %arg7[%c0_16, %c0_17, %c0_18, %c0_19], %57 {strides = array<i32>} : memref<1x2x9x128xf32, #tpu.memory_space<vmem>>, vector<1x1x9x128xf32>,
    %c0_20 = arith.constant 0 : index
    %c1 = arith.constant 1 : index
    %c0_21 = arith.constant 0 : index
    %c0_22 = arith.constant 0 : index
    %58 = vector.load %arg1[%c0_20, %c1, %c0_21, %c0_22] : memref<1x2x9x128xbf16, #tpu.memory_space<vmem>>, vector<1x1x9x128xbf16>
    %59 = vector.shape_cast %58 : vector<1x1x9x128xbf16> to vector<9x128xbf16>
    %60 = arith.extf %59 : vector<9x128xbf16> to vector<9x128xf32>
    %61 = vector.extract_strided_slice %60 {offsets = [0, 0], sizes = [9, 1], strides = [1, 1]} : vector<9x128xf32> to vector<9x1xf32>
    %62 = vector.extract_strided_slice %3 {offsets = [0, 0], sizes = [9, 128], strides = [1, 1]} : vector<9x1024xf32> to vector<9x128xf32>
    %63 = vector.broadcast %61 : vector<9x1xf32> to vector<9x128xf32>
    %64 = arith.mulf %63, %62 : vector<9x128xf32>
    %65 = vector.extract_strided_slice %60 {offsets = [0, 1], sizes = [9, 1], strides = [1, 1]} : vector<9x128xf32> to vector<9x1xf32>
    %66 = vector.extract_strided_slice %3 {offsets = [0, 128], sizes = [9, 128], strides = [1, 1]} : vector<9x1024xf32> to vector<9x128xf32>
    %67 = vector.broadcast %65 : vector<9x1xf32> to vector<9x128xf32>
    %68 = arith.mulf %67, %66 : vector<9x128xf32>
    %69 = arith.addf %64, %68 : vector<9x128xf32>
    %70 = vector.extract_strided_slice %60 {offsets = [0, 2], sizes = [9, 1], strides = [1, 1]} : vector<9x128xf32> to vector<9x1xf32>
    %71 = vector.extract_strided_slice %3 {offsets = [0, 256], sizes = [9, 128], strides = [1, 1]} : vector<9x1024xf32> to vector<9x128xf32>
    %72 = vector.broadcast %70 : vector<9x1xf32> to vector<9x128xf32>
    %73 = arith.mulf %72, %71 : vector<9x128xf32>
    %74 = arith.addf %69, %73 : vector<9x128xf32>
    %75 = vector.extract_strided_slice %60 {offsets = [0, 3], sizes = [9, 1], strides = [1, 1]} : vector<9x128xf32> to vector<9x1xf32>
    %76 = vector.extract_strided_slice %3 {offsets = [0, 384], sizes = [9, 128], strides = [1, 1]} : vector<9x1024xf32> to vector<9x128xf32>
    %77 = vector.broadcast %75 : vector<9x1xf32> to vector<9x128xf32>
    %78 = arith.mulf %77, %76 : vector<9x128xf32>
    %79 = arith.addf %74, %78 : vector<9x128xf32>
    %80 = vector.extract_strided_slice %60 {offsets = [0, 4], sizes = [9, 1], strides = [1, 1]} : vector<9x128xf32> to vector<9x1xf32>
    %81 = vector.extract_strided_slice %3 {offsets = [0, 512], sizes = [9, 128], strides = [1, 1]} : vector<9x1024xf32> to vector<9x128xf32>
    %82 = vector.broadcast %80 : vector<9x1xf32> to vector<9x128xf32>
    %83 = arith.mulf %82, %81 : vector<9x128xf32>
    %84 = arith.addf %79, %83 : vector<9x128xf32>
    %85 = vector.extract_strided_slice %60 {offsets = [0, 5], sizes = [9, 1], strides = [1, 1]} : vector<9x128xf32> to vector<9x1xf32>
    %86 = vector.extract_strided_slice %3 {offsets = [0, 640], sizes = [9, 128], strides = [1, 1]} : vector<9x1024xf32> to vector<9x128xf32>
    %87 = vector.broadcast %85 : vector<9x1xf32> to vector<9x128xf32>
    %88 = arith.mulf %87, %86 : vector<9x128xf32>
    %89 = arith.addf %84, %88 : vector<9x128xf32>
    %90 = vector.extract_strided_slice %60 {offsets = [0, 6], sizes = [9, 1], strides = [1, 1]} : vector<9x128xf32> to vector<9x1xf32>
    %91 = vector.extract_strided_slice %3 {offsets = [0, 768], sizes = [9, 128], strides = [1, 1]} : vector<9x1024xf32> to vector<9x128xf32>
    %92 = vector.broadcast %90 : vector<9x1xf32> to vector<9x128xf32>
    %93 = arith.mulf %92, %91 : vector<9x128xf32>
    %94 = arith.addf %89, %93 : vector<9x128xf32>
    %95 = vector.extract_strided_slice %60 {offsets = [0, 7], sizes = [9, 1], strides = [1, 1]} : vector<9x128xf32> to vector<9x1xf32>
    %96 = vector.extract_strided_slice %3 {offsets = [0, 896], sizes = [9, 128], strides = [1, 1]} : vector<9x1024xf32> to vector<9x128xf32>
    %97 = vector.broadcast %95 : vector<9x1xf32> to vector<9x128xf32>
    %98 = arith.mulf %97, %96 : vector<9x128xf32>
    %99 = arith.addf %94, %98 : vector<9x128xf32>
    %c0_23 = arith.constant 0 : index
    %c0_24 = arith.constant 0 : index
    %100 = vector.load %arg4[%c0_23, %c0_24] : memref<128x128xbf16, #tpu.memory_space<vmem>>, vector<128x128xbf16>
    %cst_25 = arith.constant dense<0.000000e+00> : vector<9x128xf32>
    %101 = tpu.matmul %59, %100, %cst_25 {dimension_numbers = #tpu.dot_dimension_numbers<[1], [0], [0], [1], [0, 0, 1, 1], [], []>} : vector<9x128xbf16>, vector<128x128xbf16>, vector<9x128xf32> -> vector<9x128xf32>
    %102 = arith.addf %99, %101 : vector<9x128xf32>
    %103 = arith.addf %102, %5 : vector<9x128xf32>
    %c0_26 = arith.constant 0 : index
    %c0_27 = arith.constant 0 : index
    %104 = vector.load %arg6[%c0_26, %c0_27] : memref<1x128xf32, #tpu.memory_space<vmem>>, vector<1x128xf32>
    %105 = vector.broadcast %104 : vector<1x128xf32> to vector<9x128xf32>
    %106 = arith.addf %103, %105 : vector<9x128xf32>
    %c0_28 = arith.constant 0 : index
    %c1_29 = arith.constant 1 : index
    %c0_30 = arith.constant 0 : index
    %c0_31 = arith.constant 0 : index
    %107 = vector.load %arg7[%c0_28, %c1_29, %c0_30, %c0_31] : memref<1x2x9x128xf32, #tpu.memory_space<vmem>>, vector<1x1x9x128xf32>
    %108 = vector.shape_cast %107 : vector<1x1x9x128xf32> to vector<9x128xf32>
    %109 = vector.shape_cast %106 : vector<9x128xf32> to vector<1x1x9x128xf32>
    tpu.vector_store %arg7[%c0_28, %c1_29, %c0_30, %c0_31], %109 {strides = array<i32>} : memref<1x2x9x128xf32, #tpu.memory_space<vmem>>, vector<1x1x9x128xf32>,
    return
  }
  func.func @transform_0(%arg0: i32) -> (i32, i32, i32, i32) {
    %c0_i32 = arith.constant 0 : i32
    %c0_i32_0 = arith.constant 0 : i32
    %c0_i32_1 = arith.constant 0 : i32
    %c0_i32_2 = arith.constant 0 : i32
    return %arg0, %c0_i32, %c0_i32_0, %c0_i32_1 : i32, i32, i32, i32
  }
  func.func @transform_1(%arg0: i32) -> (i32, i32, i32) {
    %c0_i32 = arith.constant 0 : i32
    %c0_i32_0 = arith.constant 0 : i32
    %c0_i32_1 = arith.constant 0 : i32
    return %arg0, %c0_i32, %c0_i32_0 : i32, i32, i32
  }
  func.func @transform_2(%arg0: i32) -> (i32, i32) {
    %c0_i32 = arith.constant 0 : i32
    %c0_i32_0 = arith.constant 0 : i32
    %c0_i32_1 = arith.constant 0 : i32
    return %c0_i32, %c0_i32_0 : i32, i32
  }
  func.func @transform_3(%arg0: i32) -> (i32, i32) {
    %c0_i32 = arith.constant 0 : i32
    %c0_i32_0 = arith.constant 0 : i32
    %c0_i32_1 = arith.constant 0 : i32
    return %c0_i32, %c0_i32_0 : i32, i32
  }
  func.func @transform_4(%arg0: i32) -> (i32, i32) {
    %c0_i32 = arith.constant 0 : i32
    %c0_i32_0 = arith.constant 0 : i32
    %c0_i32_1 = arith.constant 0 : i32
    return %c0_i32, %c0_i32_0 : i32, i32
  }
  func.func @transform_5(%arg0: i32) -> (i32, i32) {
    %c0_i32 = arith.constant 0 : i32
    %c0_i32_0 = arith.constant 0 : i32
    %c0_i32_1 = arith.constant 0 : i32
    return %c0_i32, %c0_i32_0 : i32, i32
  }
  func.func @transform_6(%arg0: i32) -> (i32, i32, i32, i32) {
    %c0_i32 = arith.constant 0 : i32
    %c0_i32_0 = arith.constant 0 : i32
    %c0_i32_1 = arith.constant 0 : i32
    %c0_i32_2 = arith.constant 0 : i32
    return %arg0, %c0_i32, %c0_i32_0, %c0_i32_1 : i32, i32, i32, i32
  }
}

</mosaic_0001>

<llo_original>
// kernel: biaffine_parser_forward.3
$region0: #{biaffine_parser_forward.3}
  #allocation0 [shape = 'u32[]', space=smem, size = 0x4, offset = 0x4, fixed_abs, tag = 'smem constant byte address 0x4 - core index']
  #allocation1 [shape = 'u32[144,128]{1,0:T(1,128)}', space=vmem, size = 0x12000, scoped, tag = 'internal scratch']
  %s0 = inlined_call_operand.vmem [shape: bf16[24,32], index: 0, kind: input, shape index: {}]
  %s1 = inlined_call_operand.vmem [shape: bf16[32,512], index: 1, kind: input, shape index: {}]
  %s2 = inlined_call_operand.vmem [shape: f32[1,512], index: 2, kind: input, shape index: {}]
  %s3 = inlined_call_operand.vmem [shape: bf16[24,512], index: 3, kind: output, shape index: {}]
  %s4 = sld [smem:[#allocation0]]
  $region22: #{biaffine_parser_forward.3} parent=0
    _
  %s6 = ssub.s32 1, %s4
  %s7 = scalar_select 0, %s6, %s4
  // Predicated region
  $region2: #{biaffine_parser_forward.3} parent=0 // pred_check
    _
  $region3: #{biaffine_parser_forward.3} parent=0 // pred_check_branch
    %9 = sbr.rel (0) target = $region5
  $region4: #{biaffine_parser_forward.3} parent=0 // pred_region
    _
  $region5: #{biaffine_parser_forward.3} parent=0 // pred_fallthru
    _
  // Predicated region
  $region6: #{biaffine_parser_forward.3} parent=0 // pred_check
    _
  $region7: #{biaffine_parser_forward.3} parent=0 // pred_check_branch
    %11 = sbr.rel (0) target = $region9
  $region8: #{biaffine_parser_forward.3} parent=0 // pred_region
    _
  $region9: #{biaffine_parser_forward.3} parent=0 // pred_fallthru
    _
  // Predicated region
  $region10: #{biaffine_parser_forward.3} parent=0 // pred_check
    _
  $region11: #{biaffine_parser_forward.3} parent=0 // pred_check_branch
    %13 = sbr.rel (0) target = $region13
  $region12: #{biaffine_parser_forward.3} parent=0 // pred_region
    _
  $region13: #{biaffine_parser_forward.3} parent=0 // pred_fallthru
    _
  %v15 = vld [vmem:[%s0] sm:$0xf]
  %v16 = vld [vmem:[%s0 + $0x4] sm:$0xf]
  %v17 = vld [vmem:[%s0 + $0x8] sm:$0xf]
  %v18 = vld [vmem:[%s1] sm:$0xff]
  %v19 = vld [vmem:[%s1 + $0x8] sm:$0xff]
  %v20 = vld [vmem:[%s1 + $0x10] sm:$0xff]
  %v21 = vld [vmem:[%s1 + $0x18] sm:$0xff]
  %v22 = vld [vmem:[%s1 + $0x20] sm:$0xff]
  %v23 = vld [vmem:[%s1 + $0x28] sm:$0xff]
  %v24 = vld [vmem:[%s1 + $0x30] sm:$0xff]
  %v25 = vld [vmem:[%s1 + $0x38] sm:$0xff]
  %v26 = vld [vmem:[%s2] sm:$0xf]
  %v28 = vlaneseq
  %v29 = vshrl.u32 %v28, 7
  %v30 = vsub.s32 0, %v29
  %v31 = vrot.slane %v26, %v30
  %v32 = vlaneseq
  %v33 = vshrl.u32 %v32, 7
  %v34 = vsub.s32 1, %v33
  %v35 = vrot.slane %v26, %v34
  %v36 = vlaneseq
  %v37 = vshrl.u32 %v36, 7
  %v38 = vsub.s32 2, %v37
  %v39 = vrot.slane %v26, %v38
  %v40 = vlaneseq
  %v41 = vshrl.u32 %v40, 7
  %v42 = vsub.s32 3, %v41
  %v43 = vrot.slane %v26, %v42
  %v51 = vunpack.c.l.b16 %v15
  %v52 = vunpack.c.l.b16 %v16
  %v53 = vunpack.c.l.b16 %v17
  %v54 = vpack.c.b16 %v52, %v51
  %v55 = vpack.c.b16 %v53, %v53
  %v64 = vunpack.c.l.b16 %v18
  %v65 = vunpack.c.h.b16 %v18
  %v66 = vunpack.c.l.b16 %v19
  %v67 = vunpack.c.h.b16 %v19
  %v68 = vunpack.c.l.b16 %v20
  %v69 = vunpack.c.h.b16 %v20
  %v70 = vunpack.c.l.b16 %v21
  %v71 = vunpack.c.h.b16 %v21
  %v72 = vunpack.c.l.b16 %v22
  %v73 = vunpack.c.h.b16 %v22
  %v74 = vunpack.c.l.b16 %v23
  %v75 = vunpack.c.h.b16 %v23
  %v76 = vunpack.c.l.b16 %v24
  %v77 = vunpack.c.h.b16 %v24
  %v78 = vunpack.c.l.b16 %v25
  %v79 = vunpack.c.h.b16 %v25
  %v80 = vpack.c.b16 %v68, %v64
  %v81 = vpack.c.b16 %v69, %v65
  %v82 = vpack.c.b16 %v70, %v66
  %v83 = vpack.c.b16 %v71, %v67
  %v84 = vpack.c.b16 %v76, %v72
  %v85 = vpack.c.b16 %v77, %v73
  %v86 = vpack.c.b16 %v78, %v74
  %v87 = vpack.c.b16 %v79, %v75
  %vm96 = vcmask 261120
  %v98 = vsel %vm96, %v54, 0
  %v101 = vsel %vm96, %v55, 0
  %103 = vmatprep.subr.bf16.mxu0 %v81
  %104 = vmatpush1.bf16.msra.mxu0 %v80
  %105 = vmatprep.subr.bf16.mxu0 %v85
  %106 = vmatpush1.bf16.msra.mxu0 %v84
  %107 = vmatprep.subr.bf16.mxu0 0
  %108 = vmatpush1.bf16.msra.mxu0 0
  %109 = vmatprep.subr.bf16.mxu0 0
  %110 = vmatpush1.bf16.msra.mxu0 0
  %111 = vmatprep.subr.bf16.mxu0 0
  %112 = vmatpush1.bf16.msra.mxu0 0
  %113 = vmatprep.subr.bf16.mxu0 0
  %114 = vmatpush1.bf16.msra.mxu0 0
  %115 = vmatprep.subr.bf16.mxu0 0
  %116 = vmatpush1.bf16.msra.mxu0 0
  %117 = vmatprep.subr.bf16.mxu0 0
  %118 = vmatpush1.bf16.msra.mxu0 0
  %119 = vmatprep.subr.bf16.mxu0 0
  %120 = vmatpush1.bf16.msra.mxu0 0
  %121 = vmatprep.subr.bf16.mxu0 0
  %122 = vmatpush1.bf16.msra.mxu0 0
  %123 = vmatprep.subr.bf16.mxu0 0
  %124 = vmatpush1.bf16.msra.mxu0 0
  %125 = vmatprep.subr.bf16.mxu0 0
  %126 = vmatpush1.bf16.msra.mxu0 0
  %127 = vmatprep.subr.bf16.mxu0 0
  %128 = vmatpush1.bf16.msra.mxu0 0
  %129 = vmatprep.subr.bf16.mxu0 0
  %130 = vmatpush1.bf16.msra.mxu0 0
  %131 = vmatprep.subr.bf16.mxu0 0
  %132 = vmatpush1.bf16.msra.mxu0 0
  %133 = vmatprep.subr.bf16.mxu0 0
  %134 = vmatpush1.bf16.msra.mxu0 0
  %135 = vmatprep.mubr.bf16.mxu0 0
  %136 = vmatmul.mubr.bf16.gmra.mrb[0].mxu0 %v98
  %v137 = vpop.f32.mrb[0].mxu0
  %v138 = vadd.f32 %v31, %v137
  %v139 = vpop.f32.mrb[0].mxu0
  %v140 = vadd.f32 %v35, %v139
  %v141 = vpop.f32.mrb[0].mxu0
  %v142 = vadd.f32 %v31, %v141
  %v143 = vpop.f32.mrb[0].mxu0
  %v144 = vadd.f32 %v35, %v143
  %145 = vmatprep.mubr.bf16.mxu0 0
  %146 = vmatmul.mubr.bf16.gmra.mrb[0].mxu0 %v101
  %v147 = vpop.f32.mrb[0].mxu0
  %v148 = vadd.f32 %v31, %v147
  %v149 = vpop.f32.mrb[0].mxu0
  %v150 = vadd.f32 %v35, %v149
  %v151 = vpop.f32.mrb[0].mxu0
  %v152 = vpop.f32.mrb[0].mxu0
  %153 = vdwg.mxu0
  %154 = vmatprep.subr.bf16.mxu0 %v83
  %155 = vmatpush1.bf16.msra.mxu0 %v82
  %156 = vmatprep.subr.bf16.mxu0 %v87
  %157 = vmatpush1.bf16.msra.mxu0 %v86
  %158 = vmatprep.subr.bf16.mxu0 0
  %159 = vmatpush1.bf16.msra.mxu0 0
  %160 = vmatprep.subr.bf16.mxu0 0
  %161 = vmatpush1.bf16.msra.mxu0 0
  %162 = vmatprep.subr.bf16.mxu0 0
  %163 = vmatpush1.bf16.msra.mxu0 0
  %164 = vmatprep.subr.bf16.mxu0 0
  %165 = vmatpush1.bf16.msra.mxu0 0
  %166 = vmatprep.subr.bf16.mxu0 0
  %167 = vmatpush1.bf16.msra.mxu0 0
  %168 = vmatprep.subr.bf16.mxu0 0
  %169 = vmatpush1.bf16.msra.mxu0 0
  %170 = vmatprep.subr.bf16.mxu0 0
  %171 = vmatpush1.bf16.msra.mxu0 0
  %172 = vmatprep.subr.bf16.mxu0 0
  %173 = vmatpush1.bf16.msra.mxu0 0
  %174 = vmatprep.subr.bf16.mxu0 0
  %175 = vmatpush1.bf16.msra.mxu0 0
  %176 = vmatprep.subr.bf16.mxu0 0
  %177 = vmatpush1.bf16.msra.mxu0 0
  %178 = vmatprep.subr.bf16.mxu0 0
  %179 = vmatpush1.bf16.msra.mxu0 0
  %180 = vmatprep.subr.bf16.mxu0 0
  %181 = vmatpush1.bf16.msra.mxu0 0
  %182 = vmatprep.subr.bf16.mxu0 0
  %183 = vmatpush1.bf16.msra.mxu0 0
  %184 = vmatprep.subr.bf16.mxu0 0
  %185 = vmatpush1.bf16.msra.mxu0 0
  %186 = vmatprep.mubr.bf16.mxu0 0
  %187 = vmatmul.mubr.bf16.gmra.mrb[0].mxu0 %v98
  %v188 = vpop.f32.mrb[0].mxu0
  %v189 = vadd.f32 %v39, %v188
  %v190 = vpop.f32.mrb[0].mxu0
  %v191 = vadd.f32 %v43, %v190
  %v192 = vpop.f32.mrb[0].mxu0
  %v193 = vadd.f32 %v39, %v192
  %v194 = vpop.f32.mrb[0].mxu0
  %v195 = vadd.f32 %v43, %v194
  %196 = vmatprep.mubr.bf16.mxu0 0
  %197 = vmatmul.mubr.bf16.gmra.mrb[0].mxu0 %v101
  %v198 = vpop.f32.mrb[0].mxu0
  %v199 = vadd.f32 %v39, %v198
  %v200 = vpop.f32.mrb[0].mxu0
  %v201 = vadd.f32 %v43, %v200
  %v202 = vpop.f32.mrb[0].mxu0
  %v203 = vpop.f32.mrb[0].mxu0
  %204 = vdwg.mxu0
  %vm205 = vcmp.gt.f32.partialorder %v138, 0.0
  %vm206 = vcmp.gt.f32.partialorder %v140, 0.0
  %vm207 = vcmp.gt.f32.partialorder %v189, 0.0
  %vm208 = vcmp.gt.f32.partialorder %v191, 0.0
  %vm209 = vcmp.gt.f32.partialorder %v142, 0.0
  %vm210 = vcmp.gt.f32.partialorder %v144, 0.0
  %vm211 = vcmp.gt.f32.partialorder %v193, 0.0
  %vm212 = vcmp.gt.f32.partialorder %v195, 0.0
  %vm213 = vcmp.gt.f32.partialorder %v148, 0.0
  %vm214 = vcmp.gt.f32.partialorder %v150, 0.0
  %vm215 = vcmp.gt.f32.partialorder %v199, 0.0
  %vm216 = vcmp.gt.f32.partialorder %v201, 0.0
  %v217 = vmin.f32 %v138, 0.0
  %v218 = vmin.f32 %v140, 0.0
  %v219 = vmin.f32 %v189, 0.0
  %v220 = vmin.f32 %v191, 0.0
  %v221 = vmin.f32 %v142, 0.0
  %v222 = vmin.f32 %v144, 0.0
  %v223 = vmin.f32 %v193, 0.0
  %v224 = vmin.f32 %v195, 0.0
  %v225 = vmin.f32 %v148, 0.0
  %v226 = vmin.f32 %v150, 0.0
  %v227 = vmin.f32 %v199, 0.0
  %v228 = vmin.f32 %v201, 0.0
  %v229 = vmul.f32 %v217, 1.442695
  %v230 = vpow.pop %v229
  %v231 = vmul.f32 %v218, 1.442695
  %v232 = vpow.pop %v231
  %v233 = vmul.f32 %v219, 1.442695
  %v234 = vpow.pop %v233
  %v235 = vmul.f32 %v220, 1.442695
  %v236 = vpow.pop %v235
  %v237 = vmul.f32 %v221, 1.442695
  %v238 = vpow.pop %v237
  %v239 = vmul.f32 %v222, 1.442695
  %v240 = vpow.pop %v239
  %v241 = vmul.f32 %v223, 1.442695
  %v242 = vpow.pop %v241
  %v243 = vmul.f32 %v224, 1.442695
  %v244 = vpow.pop %v243
  %v245 = vmul.f32 %v225, 1.442695
  %v246 = vpow.pop %v245
  %v247 = vmul.f32 %v226, 1.442695
  %v248 = vpow.pop %v247
  %v249 = vmul.f32 %v227, 1.442695
  %v250 = vpow.pop %v249
  %v251 = vmul.f32 %v228, 1.442695
  %v252 = vpow.pop %v251
  %v253 = vsub.f32 %v230, 1.0
  %v254 = vsub.f32 %v232, 1.0
  %v255 = vsub.f32 %v234, 1.0
  %v256 = vsub.f32 %v236, 1.0
  %v257 = vsub.f32 %v238, 1.0
  %v258 = vsub.f32 %v240, 1.0
  %v259 = vsub.f32 %v242, 1.0
  %v260 = vsub.f32 %v244, 1.0
  %v261 = vsub.f32 %v246, 1.0
  %v262 = vsub.f32 %v248, 1.0
  %v263 = vsub.f32 %v250, 1.0
  %v264 = vsub.f32 %v252, 1.0
  %v265 = vsel %vm205, %v138, %v253
  %v266 = vsel %vm206, %v140, %v254
  %v267 = vsel %vm207, %v189, %v255
  %v268 = vsel %vm208, %v191, %v256
  %v269 = vsel %vm209, %v142, %v257
  %v270 = vsel %vm210, %v144, %v258
  %v271 = vsel %vm211, %v193, %v259
  %v272 = vsel %vm212, %v195, %v260
  %v273 = vsel %vm213, %v148, %v261
  %v274 = vsel %vm214, %v150, %v262
  %v275 = vsel %vm215, %v199, %v263
  %v276 = vsel %vm216, %v201, %v264
  %v277 = vpack.c.bf16 %v269, %v265
  %v278 = vpack.c.bf16 %v270, %v266
  %v279 = vpack.c.bf16 %v271, %v267
  %v280 = vpack.c.bf16 %v272, %v268
  %v281 = vpack.c.bf16 %v273, %v273
  %v282 = vpack.c.bf16 %v274, %v274
  %v283 = vpack.c.bf16 %v275, %v275
  %v284 = vpack.c.bf16 %v276, %v276
  %v293 = vunpack.c.l.b16 %v277
  %v294 = vunpack.c.l.b16 %v278
  %v295 = vunpack.c.l.b16 %v279
  %v296 = vunpack.c.l.b16 %v280
  %v297 = vunpack.c.h.b16 %v277
  %v298 = vunpack.c.h.b16 %v278
  %v299 = vunpack.c.h.b16 %v279
  %v300 = vunpack.c.h.b16 %v280
  %v301 = vunpack.c.l.b16 %v281
  %v302 = vunpack.c.l.b16 %v282
  %v303 = vunpack.c.l.b16 %v283
  %v304 = vunpack.c.l.b16 %v284
  %v305 = vpack.c.b16 %v294, %v293
  %v306 = vpack.c.b16 %v296, %v295
  %v307 = vpack.c.b16 %v298, %v297
  %v308 = vpack.c.b16 %v300, %v299
  %v309 = vpack.c.b16 %v302, %v301
  %v310 = vpack.c.b16 %v304, %v303
  %317 = vst [vmem:[%s3] sm:$0xff] %v305
  %318 = vst [vmem:[%s3 + $0x8] sm:$0xff] %v306
  %319 = vst [vmem:[%s3 + $0x10] sm:$0xff] %v307
  %320 = vst [vmem:[%s3 + $0x18] sm:$0xff] %v308
  %321 = vst [vmem:[%s3 + $0x20] sm:$0xff] %v309
  %322 = vst [vmem:[%s3 + $0x28] sm:$0xff] %v310
  // Predicated region
  $region14: #{biaffine_parser_forward.3} parent=0 // pred_check
    _
  $region15: #{biaffine_parser_forward.3} parent=0 // pred_check_branch
    %324 = sbr.rel (0) target = $region17
  $region16: #{biaffine_parser_forward.3} parent=0 // pred_region
    _
  $region17: #{biaffine_parser_forward.3} parent=0 // pred_fallthru
    _
  // Predicated region
  $region18: #{biaffine_parser_forward.3} parent=0 // pred_check
    _
  $region19: #{biaffine_parser_forward.3} parent=0 // pred_check_branch
    %326 = sbr.rel (0) target = $region21
  $region20: #{biaffine_parser_forward.3} parent=0 // pred_region
    _
  $region21: #{biaffine_parser_forward.3} parent=0 // pred_fallthru
    _

// kernel: biaffine_parser_forward.4
$region0: #{biaffine_parser_forward.4}
  #allocation0 [shape = 'u32[]', space=smem, size = 0x4, offset = 0x4, fixed_abs, tag = 'smem constant byte address 0x4 - core index']
  #allocation1 [shape = 'u32[144,128]{1,0:T(1,128)}', space=vmem, size = 0x12000, scoped, tag = 'internal scratch']
  #allocation2 [shape = 'f32[1,1]{1,0:T(1,128)S(6)}', space=smem, size = 0x200, scoped, tag = 'scoped memory for biaffine_parser_forward.4']
  %s0 = inlined_call_operand.vmem [shape: bf16[2,16,128], index: 0, kind: input, shape index: {}]
  %s1 = inlined_call_operand.vmem [shape: bf16[2,128,128], index: 1, kind: input, shape index: {}]
  %s2 = inlined_call_operand.vmem [shape: bf16[128,128], index: 2, kind: input, shape index: {}]
  %s3 = inlined_call_operand.vmem [shape: bf16[128,1], index: 3, kind: input, shape index: {}]
  %s4 = inlined_call_operand.vmem [shape: bf16[1,128], index: 4, kind: input, shape index: {}]
  %s5 = inlined_call_operand.<no memory space> [shape: f32[1,1], index: 5, kind: input, shape index: {}]
  %s6 = inlined_call_operand.vmem [shape: f32[2,16,128], index: 6, kind: output, shape index: {}]
  %s7 = sld [smem:[#allocation0]]
  $region57: #{biaffine_parser_forward.4} parent=0
    _
  %s9 = ssub.s32 1, %s7
  %s10 = scalar_select 0, %s9, %s7
  %11 = sst [smem:[#allocation2]] %s5
  loop: start=0, step=1, limit=4
  $region2: #{biaffine_parser_forward.4} parent=0 // loop_pre_header
    _
  $region3: #{biaffine_parser_forward.4} parent=0 // loop_header
    %s13 = sphi 0, %s17
    %p14 = scmp.ge.s32.totalorder %s13, 4
    %s20 = sphi 0, %s32
    %s21 = sphi 0, %s28
    %s22 = sphi 0, %s20
    %s23 = sphi 0, %s21
    %s24 = sphi 0, %s22
    %s25 = sphi 0, %s23
    %s37 = sphi 0, %s39
    %s40 = sphi 0, %s37
    %s41 = sphi 0, %s40
    %s57 = sphi 0, %s41
    %s63 = sphi 0, %s65
    %s66 = sphi 0, %s63
    %s67 = sphi 0, %s66
    %s83 = sphi 0, %s67
    %s87 = sphi 0, %s87
    %s89 = sphi 0, %s87
    %s90 = sphi 0, %s89
    %s104 = sphi 0, %s90
    %s108 = sphi 0, %s108
    %s110 = sphi 0, %s108
    %s111 = sphi 0, %s110
    %s125 = sphi 0, %s111
    %s129 = sphi 0, %s129
    %s131 = sphi 0, %s129
    %s132 = sphi 0, %s131
    %s146 = sphi 0, %s132
    %s150 = sphi 0, %s150
    %s152 = sphi 0, %s150
    %s153 = sphi 0, %s152
    %s167 = sphi 0, %s153
    %s175 = sphi 0, %s177
    %s178 = sphi 0, %s175
    %s179 = sphi 0, %s178
    %s195 = sphi 0, %s179
  $region4: #{biaffine_parser_forward.4} parent=0 // loop_header_branch
    %16 = sbr.rel (%p14) target = $region8
  $region5: #{biaffine_parser_forward.4} parent=0 // loop_body
    %s18 = ssub.s32 %s13, 1
    %s19 = ssub.s32 %s13, 2
    %s26 = sadd.s32 1, %s21
    %p27 = scmp.ge.s32.totalorder %s26, 1
    %s28 = scalar_select %p27, 0, %s26
    %s29 = sadd.s32 1, %s20
    %s30 = scalar_select %p27, %s29, %s20
    %p31 = scmp.ge.s32.totalorder %s30, 2
    %s32 = scalar_select %p31, 0, %s30
    %s33 = ssub.s32 %s20, %s32
    %s34 = ssub.s32 %s21, %s28
    %s35 = sor.u32 %s33, %s34
    %p36 = scmp.eq.s32.totalorder %s35, 0
    %s38 = sadd.s32 %s37, 1
    %s39 = scalar_select %p36, %s37, %s38
    %p42 = pneg %p36
    %p43 = scmp.eq.s32.totalorder %s13, 1
    %p44 = por %p42, %p43
    %p45 = scmp.ne.s32.totalorder %s37, %s40
    %p46 = scmp.eq.s32.totalorder %s13, 0
    %p47 = por %p45, %p46
    %p48 = scmp.ne.s32.totalorder %s37, %s40
    %p49 = scmp.eq.s32.totalorder %s18, 1
    %p50 = por %p48, %p49
    %p51 = scmp.ne.s32.totalorder %s40, %s41
    %p52 = scmp.eq.s32.totalorder %s18, 0
    %p53 = por %p51, %p52
    %p54 = scmp.ne.s32.totalorder %s40, %s41
    %p55 = scmp.eq.s32.totalorder %s19, 1
    %p56 = por %p54, %p55
    %p58 = scmp.ne.s32.totalorder %s41, %s57
    %p59 = scmp.eq.s32.totalorder %s19, 0
    %p60 = por %p58, %p59
    %s61 = ssub.s32 %s20, %s32
    %p62 = scmp.eq.s32.totalorder %s61, 0
    %s64 = sadd.s32 %s63, 1
    %s65 = scalar_select %p62, %s63, %s64
    %p68 = pneg %p62
    %p69 = scmp.eq.s32.totalorder %s13, 1
    %p70 = por %p68, %p69
    %p71 = scmp.ne.s32.totalorder %s63, %s66
    %p72 = scmp.eq.s32.totalorder %s13, 0
    %p73 = por %p71, %p72
    %p74 = scmp.ne.s32.totalorder %s63, %s66
    %p75 = scmp.eq.s32.totalorder %s18, 1
    %p76 = por %p74, %p75
    %p77 = scmp.ne.s32.totalorder %s66, %s67
    %p78 = scmp.eq.s32.totalorder %s18, 0
    %p79 = por %p77, %p78
    %p80 = scmp.ne.s32.totalorder %s66, %s67
    %p81 = scmp.eq.s32.totalorder %s19, 1
    %p82 = por %p80, %p81
    %p84 = scmp.ne.s32.totalorder %s67, %s83
    %p85 = scmp.eq.s32.totalorder %s19, 0
    %p86 = por %p84, %p85
    %s88 = sadd.s32 %s87, 1
    %p91 = scmp.eq.s32.totalorder %s13, 1
    %p92 = scmp.ne.s32.totalorder %s87, %s89
    %p93 = scmp.eq.s32.totalorder %s13, 0
    %p94 = por %p92, %p93
    %p95 = scmp.ne.s32.totalorder %s87, %s89
    %p96 = scmp.eq.s32.totalorder %s18, 1
    %p97 = por %p95, %p96
    %p98 = scmp.ne.s32.totalorder %s89, %s90
    %p99 = scmp.eq.s32.totalorder %s18, 0
    %p100 = por %p98, %p99
    %p101 = scmp.ne.s32.totalorder %s89, %s90
    %p102 = scmp.eq.s32.totalorder %s19, 1
    %p103 = por %p101, %p102
    %p105 = scmp.ne.s32.totalorder %s90, %s104
    %p106 = scmp.eq.s32.totalorder %s19, 0
    %p107 = por %p105, %p106
    %s109 = sadd.s32 %s108, 1
    %p112 = scmp.eq.s32.totalorder %s13, 1
    %p113 = scmp.ne.s32.totalorder %s108, %s110
    %p114 = scmp.eq.s32.totalorder %s13, 0
    %p115 = por %p113, %p114
    %p116 = scmp.ne.s32.totalorder %s108, %s110
    %p117 = scmp.eq.s32.totalorder %s18, 1
    %p118 = por %p116, %p117
    %p119 = scmp.ne.s32.totalorder %s110, %s111
    %p120 = scmp.eq.s32.totalorder %s18, 0
    %p121 = por %p119, %p120
    %p122 = scmp.ne.s32.totalorder %s110, %s111
    %p123 = scmp.eq.s32.totalorder %s19, 1
    %p124 = por %p122, %p123
    %p126 = scmp.ne.s32.totalorder %s111, %s125
    %p127 = scmp.eq.s32.totalorder %s19, 0
    %p128 = por %p126, %p127
    %s130 = sadd.s32 %s129, 1
    %p133 = scmp.eq.s32.totalorder %s13, 1
    %p134 = scmp.ne.s32.totalorder %s129, %s131
    %p135 = scmp.eq.s32.totalorder %s13, 0
    %p136 = por %p134, %p135
    %p137 = scmp.ne.s32.totalorder %s129, %s131
    %p138 = scmp.eq.s32.totalorder %s18, 1
    %p139 = por %p137, %p138
    %p140 = scmp.ne.s32.totalorder %s131, %s132
    %p141 = scmp.eq.s32.totalorder %s18, 0
    %p142 = por %p140, %p141
    %p143 = scmp.ne.s32.totalorder %s131, %s132
    %p144 = scmp.eq.s32.totalorder %s19, 1
    %p145 = por %p143, %p144
    %p147 = scmp.ne.s32.totalorder %s132, %s146
    %p148 = scmp.eq.s32.totalorder %s19, 0
    %p149 = por %p147, %p148
    %s151 = sadd.s32 %s150, 1
    %p154 = scmp.eq.s32.totalorder %s13, 1
    %p155 = scmp.ne.s32.totalorder %s150, %s152
    %p156 = scmp.eq.s32.totalorder %s13, 0
    %p157 = por %p155, %p156
    %p158 = scmp.ne.s32.totalorder %s150, %s152
    %p159 = scmp.eq.s32.totalorder %s18, 1
    %p160 = por %p158, %p159
    %p161 = scmp.ne.s32.totalorder %s152, %s153
    %p162 = scmp.eq.s32.totalorder %s18, 0
    %p163 = por %p161, %p162
    %p164 = scmp.ne.s32.totalorder %s152, %s153
    %p165 = scmp.eq.s32.totalorder %s19, 1
    %p166 = por %p164, %p165
    %p168 = scmp.ne.s32.totalorder %s153, %s167
    %p169 = scmp.eq.s32.totalorder %s19, 0
    %p170 = por %p168, %p169
    %s171 = ssub.s32 %s20, %s32
    %s172 = ssub.s32 %s21, %s28
    %s173 = sor.u32 %s171, %s172
    %p174 = scmp.eq.s32.totalorder %s173, 0
    %s176 = sadd.s32 %s175, 1
    %s177 = scalar_select %p174, %s175, %s176
    %p180 = pneg %p174
    %p181 = scmp.eq.s32.totalorder %s13, 1
    %p182 = por %p180, %p181
    %p183 = scmp.ne.s32.totalorder %s175, %s178
    %p184 = scmp.eq.s32.totalorder %s13, 0
    %p185 = por %p183, %p184
    %p186 = scmp.ne.s32.totalorder %s175, %s178
    %p187 = scmp.eq.s32.totalorder %s18, 1
    %p188 = por %p186, %p187
    %p189 = scmp.ne.s32.totalorder %s178, %s179
    %p190 = scmp.eq.s32.totalorder %s18, 0
    %p191 = por %p189, %p190
    %p192 = scmp.ne.s32.totalorder %s178, %s179
    %p193 = scmp.eq.s32.totalorder %s19, 1
    %p194 = por %p192, %p193
    %p196 = scmp.ne.s32.totalorder %s179, %s195
    %p197 = scmp.eq.s32.totalorder %s19, 0
    %p198 = por %p196, %p197
    %p199 = scmp.le.s32.totalorder 1, %s13
    %p200 = scmp.lt.s32.totalorder %s13, 3
    %p201 = pnand %p199, %p200
    %p202 = pneg %p201
    // Predicated region
    $region9: #{biaffine_parser_forward.4} parent=5 // pred_check
      _
    $region10: #{biaffine_parser_forward.4} parent=5 // pred_check_branch
      %204 = sbr.rel (%p201) target = $region12
    $region11: #{biaffine_parser_forward.4} parent=5 // pred_region
      %s205 = ssub.s32 %s13, 1
      // Predicated region
      $region13: #{biaffine_parser_forward.4} parent=11 // pred_check
        %p206 = pneg %p100
      $region14: #{biaffine_parser_forward.4} parent=11 // pred_check_branch
        %208 = sbr.rel (%p206) target = $region16
      $region15: #{biaffine_parser_forward.4} parent=11 // pred_region
        _
      $region16: #{biaffine_parser_forward.4} parent=11 // pred_fallthru
        _
      // Predicated region
      $region17: #{biaffine_parser_forward.4} parent=11 // pred_check
        %p209 = pneg %p121
      $region18: #{biaffine_parser_forward.4} parent=11 // pred_check_branch
        %211 = sbr.rel (%p209) target = $region20
      $region19: #{biaffine_parser_forward.4} parent=11 // pred_region
        _
      $region20: #{biaffine_parser_forward.4} parent=11 // pred_fallthru
        _
      // Predicated region
      $region21: #{biaffine_parser_forward.4} parent=11 // pred_check
        %p212 = pneg %p142
      $region22: #{biaffine_parser_forward.4} parent=11 // pred_check_branch
        %214 = sbr.rel (%p212) target = $region24
      $region23: #{biaffine_parser_forward.4} parent=11 // pred_region
        _
      $region24: #{biaffine_parser_forward.4} parent=11 // pred_fallthru
        _
      // Predicated region
      $region25: #{biaffine_parser_forward.4} parent=11 // pred_check
        %p215 = pneg %p163
      $region26: #{biaffine_parser_forward.4} parent=11 // pred_check_branch
        %217 = sbr.rel (%p215) target = $region28
      $region27: #{biaffine_parser_forward.4} parent=11 // pred_region
        _
      $region28: #{biaffine_parser_forward.4} parent=11 // pred_fallthru
        _
    $region12: #{biaffine_parser_forward.4} parent=5 // pred_fallthru
      _
    %p218 = scmp.lt.s32.totalorder %s13, 2
    // Predicated region
    $region29: #{biaffine_parser_forward.4} parent=5 // pred_check
      %p219 = pneg %p218
    $region30: #{biaffine_parser_forward.4} parent=5 // pred_check_branch
      %221 = sbr.rel (%p219) target = $region32
    $region31: #{biaffine_parser_forward.4} parent=5 // pred_region
      // Predicated region
      $region33: #{biaffine_parser_forward.4} parent=31 // pred_check
        %p222 = pneg %p47
      $region34: #{biaffine_parser_forward.4} parent=31 // pred_check_branch
        %224 = sbr.rel (%p222) target = $region36
      $region35: #{biaffine_parser_forward.4} parent=31 // pred_region
        %s225 = smul.u32 2, %s21
        %p226 = scmp.lt.s32.totalorder %s20, 1
        %s227 = scalar_select %p226, %s20, 1
        %p228 = scmp.lt.s32.totalorder %s225, 1
        %s229 = scalar_select %p228, %s225, 1
        %s230 = smul.addr %s227, 2
        %s231 = sadd.s32 %s229, %s230
        %s232 = smul.addr %s231, 4
        %s233 = scalar_lea.vmem %s0, %s232
        %s234 = smul.u32 2, %s21
      $region36: #{biaffine_parser_forward.4} parent=31 // pred_fallthru
        _
      // Predicated region
      $region37: #{biaffine_parser_forward.4} parent=31 // pred_check
        %p235 = pneg %p73
      $region38: #{biaffine_parser_forward.4} parent=31 // pred_check_branch
        %237 = sbr.rel (%p235) target = $region40
      $region39: #{biaffine_parser_forward.4} parent=31 // pred_region
        %p238 = scmp.lt.s32.totalorder %s20, 1
        %s239 = scalar_select %p238, %s20, 1
        %s240 = smul.addr %s239, 16
        %s241 = smul.addr %s240, 4
        %s242 = scalar_lea.vmem %s1, %s241
      $region40: #{biaffine_parser_forward.4} parent=31 // pred_fallthru
        _
    $region32: #{biaffine_parser_forward.4} parent=5 // pred_fallthru
      _
    %p243 = scmp.le.s32.totalorder 1, %s13
    %p244 = scmp.lt.s32.totalorder %s13, 3
    %p245 = pnand %p243, %p244
    %p246 = pneg %p245
    // Predicated region
    $region41: #{biaffine_parser_forward.4} parent=5 // pred_check
      _
    $region42: #{biaffine_parser_forward.4} parent=5 // pred_check_branch
      %248 = sbr.rel (%p245) target = $region44
    $region43: #{biaffine_parser_forward.4} parent=5 // pred_region
      %s249 = ssub.s32 %s13, 1
      %s250 = smul.u32 2, %s23
      %p251 = scmp.lt.s32.totalorder %s22, 1
      %s252 = scalar_select %p251, %s22, 1
      %p253 = scmp.lt.s32.totalorder %s250, 1
      %s254 = scalar_select %p253, %s250, 1
      %s255 = smul.addr %s252, 2
      %s256 = sadd.s32 %s254, %s255
      %s257 = smul.addr %s256, 4
      %s258 = scalar_lea.vmem %s0, %s257
      %p259 = pneg %p53
      %p260 = pneg %p50
      %p261 = scmp.lt.s32.totalorder %s22, 1
      %s262 = scalar_select %p261, %s22, 1
      %s263 = smul.addr %s262, 16
      %s264 = smul.addr %s263, 4
      %s265 = scalar_lea.vmem %s1, %s264
      %p266 = pneg %p79
      %p267 = pneg %p76
      %p268 = pneg %p100
      %p269 = pneg %p97
      %p270 = pneg %p121
      %p271 = pneg %p118
      %p272 = pneg %p142
      %p273 = pneg %p139
      %p274 = pneg %p163
      %p275 = pneg %p160
      %p276 = pneg %p191
      %p277 = pneg %p188
      %s278 = smul.u32 2, %s23
      %p279 = scmp.lt.s32.totalorder %s22, 1
      %s280 = scalar_select %p279, %s22, 1
      %p281 = scmp.lt.s32.totalorder %s278, 1
      %s282 = scalar_select %p281, %s278, 1
      %s283 = smul.addr %s280, 2
      %s284 = sadd.s32 %s282, %s283
      %s285 = smul.addr %s284, 8
      %s286 = scalar_lea.vmem %s6, %s285
      %s287 = smul.u32 2, %s23
      %p288 = scmp.lt.s32.totalorder %s22, 1
      %s289 = scalar_select %p288, %s22, 1
      %p290 = scmp.lt.s32.totalorder %s287, 1
      %s291 = scalar_select %p290, %s287, 1
      %s292 = smul.addr %s289, 2
      %s293 = sadd.s32 %s291, %s292
      %s294 = smul.addr %s293, 4
      %s295 = scalar_lea.vmem %s0, %s294
      %s296 = smul.u32 2, %s23
      %p297 = scmp.lt.s32.totalorder %s22, 1
      %s298 = scalar_select %p297, %s22, 1
      %s299 = smul.addr %s298, 16
      %s300 = smul.addr %s299, 4
      %s301 = scalar_lea.vmem %s1, %s300
      %s302 = smul.u32 2, %s23
      %p303 = scmp.lt.s32.totalorder %s22, 1
      %s304 = scalar_select %p303, %s22, 1
      %p305 = scmp.lt.s32.totalorder %s302, 1
      %s306 = scalar_select %p305, %s302, 1
      %s307 = smul.addr %s304, 2
      %s308 = sadd.s32 %s306, %s307
      %s309 = smul.addr %s308, 8
      %s310 = scalar_lea.vmem %s6, %s309
      %s311 = smul.u32 2, %s23
      %v313 = vld [vmem:[%s295] sm:$0xf]
      %v314 = vld [vmem:[%s295 + $0x4] sm:$0xf]
      %v315 = vld [vmem:[%s301] sm:$0xf]
      %v316 = vld [vmem:[%s301 + $0x4] sm:$0xf]
      %v317 = vld [vmem:[%s301 + $0x8] sm:$0xf]
      %v318 = vld [vmem:[%s301 + $0xc] sm:$0xf]
      %v319 = vld [vmem:[%s301 + $0x10] sm:$0xf]
      %v320 = vld [vmem:[%s301 + $0x14] sm:$0xf]
      %v321 = vld [vmem:[%s301 + $0x18] sm:$0xf]
      %v322 = vld [vmem:[%s301 + $0x1c] sm:$0xf]
      %v323 = vld [vmem:[%s301 + $0x20] sm:$0xf]
      %v324 = vld [vmem:[%s301 + $0x24] sm:$0xf]
      %v325 = vld [vmem:[%s301 + $0x28] sm:$0xf]
      %v326 = vld [vmem:[%s301 + $0x2c] sm:$0xf]
      %v327 = vld [vmem:[%s301 + $0x30] sm:$0xf]
      %v328 = vld [vmem:[%s301 + $0x34] sm:$0xf]
      %v329 = vld [vmem:[%s301 + $0x38] sm:$0xf]
      %v330 = vld [vmem:[%s301 + $0x3c] sm:$0xf]
      %v331 = vld [vmem:[%s2] sm:$0xf]
      %v332 = vld [vmem:[%s2 + $0x4] sm:$0xf]
      %v333 = vld [vmem:[%s2 + $0x8] sm:$0xf]
      %v334 = vld [vmem:[%s2 + $0xc] sm:$0xf]
      %v335 = vld [vmem:[%s2 + $0x10] sm:$0xf]
      %v336 = vld [vmem:[%s2 + $0x14] sm:$0xf]
      %v337 = vld [vmem:[%s2 + $0x18] sm:$0xf]
      %v338 = vld [vmem:[%s2 + $0x1c] sm:$0xf]
      %v339 = vld [vmem:[%s2 + $0x20] sm:$0xf]
      %v340 = vld [vmem:[%s2 + $0x24] sm:$0xf]
      %v341 = vld [vmem:[%s2 + $0x28] sm:$0xf]
      %v342 = vld [vmem:[%s2 + $0x2c] sm:$0xf]
      %v343 = vld [vmem:[%s2 + $0x30] sm:$0xf]
      %v344 = vld [vmem:[%s2 + $0x34] sm:$0xf]
      %v345 = vld [vmem:[%s2 + $0x38] sm:$0xf]
      %v346 = vld [vmem:[%s2 + $0x3c] sm:$0xf]
      %v349 = vunpack.c.l.b16 %v313
      %v350 = vunpack.c.l.b16 %v314
      %v351 = vpack.c.b16 %v350, %v349
      %v369 = vunpack.c.l.b16 %v331
      %v370 = vunpack.c.l.b16 %v332
      %v371 = vunpack.c.l.b16 %v333
      %v372 = vunpack.c.l.b16 %v334
      %v373 = vunpack.c.l.b16 %v335
      %v374 = vunpack.c.l.b16 %v336
      %v375 = vunpack.c.l.b16 %v337
      %v376 = vunpack.c.l.b16 %v338
      %v377 = vunpack.c.l.b16 %v339
      %v378 = vunpack.c.l.b16 %v340
      %v379 = vunpack.c.l.b16 %v341
      %v380 = vunpack.c.l.b16 %v342
      %v381 = vunpack.c.l.b16 %v343
      %v382 = vunpack.c.l.b16 %v344
      %v383 = vunpack.c.l.b16 %v345
      %v384 = vunpack.c.l.b16 %v346
      %v385 = vpack.c.b16 %v370, %v369
      %v386 = vpack.c.b16 %v372, %v371
      %v387 = vpack.c.b16 %v374, %v373
      %v388 = vpack.c.b16 %v376, %v375
      %v389 = vpack.c.b16 %v378, %v377
      %v390 = vpack.c.b16 %v380, %v379
      %v391 = vpack.c.b16 %v382, %v381
      %v392 = vpack.c.b16 %v384, %v383
      %401 = vmatprep.subr.bf16.mxu0 0
      %402 = vmatpush1.bf16.msra.mxu0 %v385
      %403 = vmatprep.subr.bf16.mxu0 0
      %404 = vmatpush1.bf16.msra.mxu0 %v386
      %405 = vmatprep.subr.bf16.mxu0 0
      %406 = vmatpush1.bf16.msra.mxu0 %v387
      %407 = vmatprep.subr.bf16.mxu0 0
      %408 = vmatpush1.bf16.msra.mxu0 %v388
      %409 = vmatprep.subr.bf16.mxu0 0
      %410 = vmatpush1.bf16.msra.mxu0 %v389
      %411 = vmatprep.subr.bf16.mxu0 0
      %412 = vmatpush1.bf16.msra.mxu0 %v390
      %413 = vmatprep.subr.bf16.mxu0 0
      %414 = vmatpush1.bf16.msra.mxu0 %v391
      %415 = vmatprep.subr.bf16.mxu0 0
      %416 = vmatpush1.bf16.msra.mxu0 %v392
      %417 = vmatprep.subr.bf16.mxu0 0
      %418 = vmatpush1.bf16.msra.mxu0 0
      %419 = vmatprep.subr.bf16.mxu0 0
      %420 = vmatpush1.bf16.msra.mxu0 0
      %421 = vmatprep.subr.bf16.mxu0 0
      %422 = vmatpush1.bf16.msra.mxu0 0
      %423 = vmatprep.subr.bf16.mxu0 0
      %424 = vmatpush1.bf16.msra.mxu0 0
      %425 = vmatprep.subr.bf16.mxu0 0
      %426 = vmatpush1.bf16.msra.mxu0 0
      %427 = vmatprep.subr.bf16.mxu0 0
      %428 = vmatpush1.bf16.msra.mxu0 0
      %429 = vmatprep.subr.bf16.mxu0 0
      %430 = vmatpush1.bf16.msra.mxu0 0
      %431 = vmatprep.subr.bf16.mxu0 0
      %432 = vmatpush1.bf16.msra.mxu0 0
      %433 = vmatprep.mubr.bf16.mxu0 0
      %434 = vmatmul.mubr.bf16.gmra.mrb[0].mxu0 %v351
      %v435 = vpop.f32.mrb[0].mxu0
      %v436 = vadd.f32 0.0, %v435
      %v437 = vpop.f32.mrb[0].mxu0
      %v438 = vpop.f32.mrb[0].mxu0
      %v439 = vadd.f32 0.0, %v438
      %v440 = vpop.f32.mrb[0].mxu0
      %441 = vdwg.mxu0
      %v442 = vpack.c.bf16 %v439, %v436
      %v443 = vld [vmem:[%s3] sm:$0xf]
      %v444 = vld [vmem:[%s3 + $0x4] sm:$0xf]
      %v445 = vld [vmem:[%s3 + $0x8] sm:$0xf]
      %v446 = vld [vmem:[%s3 + $0xc] sm:$0xf]
      %v447 = vld [vmem:[%s3 + $0x10] sm:$0xf]
      %v448 = vld [vmem:[%s3 + $0x14] sm:$0xf]
      %v449 = vld [vmem:[%s3 + $0x18] sm:$0xf]
      %v450 = vld [vmem:[%s3 + $0x1c] sm:$0xf]
      %v451 = vld [vmem:[%s3 + $0x20] sm:$0xf]
      %v452 = vld [vmem:[%s3 + $0x24] sm:$0xf]
      %v453 = vld [vmem:[%s3 + $0x28] sm:$0xf]
      %v454 = vld [vmem:[%s3 + $0x2c] sm:$0xf]
      %v455 = vld [vmem:[%s3 + $0x30] sm:$0xf]
      %v456 = vld [vmem:[%s3 + $0x34] sm:$0xf]
      %v457 = vld [vmem:[%s3 + $0x38] sm:$0xf]
      %v458 = vld [vmem:[%s3 + $0x3c] sm:$0xf]
      %v475 = vunpack.c.l.b16 %v443
      %v476 = vunpack.c.l.b16 %v444
      %v477 = vunpack.c.l.b16 %v445
      %v478 = vunpack.c.l.b16 %v446
      %v479 = vunpack.c.l.b16 %v447
      %v480 = vunpack.c.l.b16 %v448
      %v481 = vunpack.c.l.b16 %v449
      %v482 = vunpack.c.l.b16 %v450
      %v483 = vunpack.c.l.b16 %v451
      %v484 = vunpack.c.l.b16 %v452
      %v485 = vunpack.c.l.b16 %v453
      %v486 = vunpack.c.l.b16 %v454
      %v487 = vunpack.c.l.b16 %v455
      %v488 = vunpack.c.l.b16 %v456
      %v489 = vunpack.c.l.b16 %v457
      %v490 = vunpack.c.l.b16 %v458
      %v491 = vpack.c.b16 %v476, %v475
      %v492 = vpack.c.b16 %v478, %v477
      %v493 = vpack.c.b16 %v480, %v479
      %v494 = vpack.c.b16 %v482, %v481
      %v495 = vpack.c.b16 %v484, %v483
      %v496 = vpack.c.b16 %v486, %v485
      %v497 = vpack.c.b16 %v488, %v487
      %v498 = vpack.c.b16 %v490, %v489
      %507 = vmatprep.subr.bf16.mxu0 0
      %508 = vmatpush1.bf16.msra.mxu0 %v491
      %509 = vmatprep.subr.bf16.mxu0 0
      %510 = vmatpush1.bf16.msra.mxu0 %v492
      %511 = vmatprep.subr.bf16.mxu0 0
      %512 = vmatpush1.bf16.msra.mxu0 %v493
      %513 = vmatprep.subr.bf16.mxu0 0
      %514 = vmatpush1.bf16.msra.mxu0 %v494
      %515 = vmatprep.subr.bf16.mxu0 0
      %516 = vmatpush1.bf16.msra.mxu0 %v495
      %517 = vmatprep.subr.bf16.mxu0 0
      %518 = vmatpush1.bf16.msra.mxu0 %v496
      %519 = vmatprep.subr.bf16.mxu0 0
      %520 = vmatpush1.bf16.msra.mxu0 %v497
      %521 = vmatprep.subr.bf16.mxu0 0
      %522 = vmatpush1.bf16.msra.mxu0 %v498
      %523 = vmatprep.subr.bf16.mxu0 0
      %524 = vmatpush1.bf16.msra.mxu0 0
      %525 = vmatprep.subr.bf16.mxu0 0
      %526 = vmatpush1.bf16.msra.mxu0 0
      %527 = vmatprep.subr.bf16.mxu0 0
      %528 = vmatpush1.bf16.msra.mxu0 0
      %529 = vmatprep.subr.bf16.mxu0 0
      %530 = vmatpush1.bf16.msra.mxu0 0
      %531 = vmatprep.subr.bf16.mxu0 0
      %532 = vmatpush1.bf16.msra.mxu0 0
      %533 = vmatprep.subr.bf16.mxu0 0
      %534 = vmatpush1.bf16.msra.mxu0 0
      %535 = vmatprep.subr.bf16.mxu0 0
      %536 = vmatpush1.bf16.msra.mxu0 0
      %537 = vmatprep.subr.bf16.mxu0 0
      %538 = vmatpush1.bf16.msra.mxu0 0
      %539 = vmatprep.mubr.bf16.mxu0 0
      %540 = vmatmul.mubr.bf16.gmra.mrb[0].mxu0 %v351
      %v541 = vpop.f32.mrb[0].mxu0
      %v542 = vadd.f32 0.0, %v541
      %v543 = vpop.f32.mrb[0].mxu0
      %v544 = vpop.f32.mrb[0].mxu0
      %v545 = vadd.f32 0.0, %v544
      %v546 = vpop.f32.mrb[0].mxu0
      %547 = vdwg.mxu0
      %v548 = vld [vmem:[%s4] sm:$0x1]
      %v565 = vunpack.c.l.b16 %v315
      %v566 = vunpack.c.l.b16 %v316
      %v567 = vunpack.c.l.b16 %v317
      %v568 = vunpack.c.l.b16 %v318
      %v569 = vunpack.c.l.b16 %v319
      %v570 = vunpack.c.l.b16 %v320
      %v571 = vunpack.c.l.b16 %v321
      %v572 = vunpack.c.l.b16 %v322
      %v573 = vunpack.c.l.b16 %v323
      %v574 = vunpack.c.l.b16 %v324
      %v575 = vunpack.c.l.b16 %v325
      %v576 = vunpack.c.l.b16 %v326
      %v577 = vunpack.c.l.b16 %v327
      %v578 = vunpack.c.l.b16 %v328
      %v579 = vunpack.c.l.b16 %v329
      %v580 = vunpack.c.l.b16 %v330
      %v581 = vpack.c.b16 %v566, %v565
      %v582 = vpack.c.b16 %v568, %v567
      %v583 = vpack.c.b16 %v570, %v569
      %v584 = vpack.c.b16 %v572, %v571
      %v585 = vpack.c.b16 %v574, %v573
      %v586 = vpack.c.b16 %v576, %v575
      %v587 = vpack.c.b16 %v578, %v577
      %v588 = vpack.c.b16 %v580, %v579
      %597 = vmatprep.subr.bf16.mxu0 0
      %598 = vmatpush1.bf16.xpose.msra.mxu0 %v581
      %599 = vmatprep.subr.bf16.mxu0 0
      %600 = vmatpush1.bf16.xpose.msra.mxu0 %v582
      %601 = vmatprep.subr.bf16.mxu0 0
      %602 = vmatpush1.bf16.xpose.msra.mxu0 %v583
      %603 = vmatprep.subr.bf16.mxu0 0
      %604 = vmatpush1.bf16.xpose.msra.mxu0 %v584
      %605 = vmatprep.subr.bf16.mxu0 0
      %606 = vmatpush1.bf16.xpose.msra.mxu0 %v585
      %607 = vmatprep.subr.bf16.mxu0 0
      %608 = vmatpush1.bf16.xpose.msra.mxu0 %v586
      %609 = vmatprep.subr.bf16.mxu0 0
      %610 = vmatpush1.bf16.xpose.msra.mxu0 %v587
      %611 = vmatprep.subr.bf16.mxu0 0
      %612 = vmatpush1.bf16.xpose.msra.mxu0 %v588
      %613 = vmatprep.subr.bf16.mxu0 0
      %614 = vmatpush1.bf16.xpose.msra.mxu0 0
      %615 = vmatprep.subr.bf16.mxu0 0
      %616 = vmatpush1.bf16.xpose.msra.mxu0 0
      %617 = vmatprep.subr.bf16.mxu0 0
      %618 = vmatpush1.bf16.xpose.msra.mxu0 0
      %619 = vmatprep.subr.bf16.mxu0 0
      %620 = vmatpush1.bf16.xpose.msra.mxu0 0
      %621 = vmatprep.subr.bf16.mxu0 0
      %622 = vmatpush1.bf16.xpose.msra.mxu0 0
      %623 = vmatprep.subr.bf16.mxu0 0
      %624 = vmatpush1.bf16.xpose.msra.mxu0 0
      %625 = vmatprep.subr.bf16.mxu0 0
      %626 = vmatpush1.bf16.xpose.msra.mxu0 0
      %627 = vmatprep.subr.bf16.mxu0 0
      %628 = vmatpush1.bf16.xpose.msra.mxu0 0
      %629 = vmatprep.mubr.bf16.mxu0 0
      %630 = vmatmul.mubr.bf16.gmra.mrb[0].mxu0 %v548
      %v631 = vpop.f32.mrb[0].mxu0
      %v632 = vadd.f32 0.0, %v631
      %v633 = vpop.f32.mrb[0].mxu0
      %v634 = vpop.f32.mrb[0].mxu0
      %v635 = vpop.f32.mrb[0].mxu0
      %636 = vdwg.mxu0
      %638 = vset.pattern.permute.xlu0 0
      %639 = vperm.xlu0 %638, %v542
      %v640 = vpop.permute.xlu0 %639
      %643 = vset.pattern.permute.xlu0 0
      %644 = vperm.xlu0 %643, %v545
      %v645 = vpop.permute.xlu0 %644
      %647 = vmatprep.subr.bf16.mxu0 0
      %648 = vmatpush1.bf16.xpose.msra.mxu0 %v581
      %649 = vmatprep.subr.bf16.mxu0 0
      %650 = vmatpush1.bf16.xpose.msra.mxu0 %v582
      %651 = vmatprep.subr.bf16.mxu0 0
      %652 = vmatpush1.bf16.xpose.msra.mxu0 %v583
      %653 = vmatprep.subr.bf16.mxu0 0
      %654 = vmatpush1.bf16.xpose.msra.mxu0 %v584
      %655 = vmatprep.subr.bf16.mxu0 0
      %656 = vmatpush1.bf16.xpose.msra.mxu0 %v585
      %657 = vmatprep.subr.bf16.mxu0 0
      %658 = vmatpush1.bf16.xpose.msra.mxu0 %v586
      %659 = vmatprep.subr.bf16.mxu0 0
      %660 = vmatpush1.bf16.xpose.msra.mxu0 %v587
      %661 = vmatprep.subr.bf16.mxu0 0
      %662 = vmatpush1.bf16.xpose.msra.mxu0 %v588
      %663 = vmatprep.subr.bf16.mxu0 0
      %664 = vmatpush1.bf16.xpose.msra.mxu0 0
      %665 = vmatprep.subr.bf16.mxu0 0
      %666 = vmatpush1.bf16.xpose.msra.mxu0 0
      %667 = vmatprep.subr.bf16.mxu0 0
      %668 = vmatpush1.bf16.xpose.msra.mxu0 0
      %669 = vmatprep.subr.bf16.mxu0 0
      %670 = vmatpush1.bf16.xpose.msra.mxu0 0
      %671 = vmatprep.subr.bf16.mxu0 0
      %672 = vmatpush1.bf16.xpose.msra.mxu0 0
      %673 = vmatprep.subr.bf16.mxu0 0
      %674 = vmatpush1.bf16.xpose.msra.mxu0 0
      %675 = vmatprep.subr.bf16.mxu0 0
      %676 = vmatpush1.bf16.xpose.msra.mxu0 0
      %677 = vmatprep.subr.bf16.mxu0 0
      %678 = vmatpush1.bf16.xpose.msra.mxu0 0
      %679 = vmatprep.mubr.bf16.mxu0 0
      %680 = vmatmul.mubr.bf16.gmra.mrb[0].mxu0 %v442
      %v681 = vpop.f32.mrb[0].mxu0
      %v682 = vadd.f32 %v640, %v681
      %v683 = vpop.f32.mrb[0].mxu0
      %v684 = vpop.f32.mrb[0].mxu0
      %v685 = vadd.f32 %v645, %v684
      %v686 = vpop.f32.mrb[0].mxu0
      %687 = vdwg.mxu0
      %v688 = vlaneseq
      %v689 = vshrl.u32 %v688, 7
      %v690 = vsub.s32 0, %v689
      %v691 = vrot.slane %v632, %v690
      %v692 = vadd.f32 %v682, %v691
      %v693 = vadd.f32 %v685, %v691
      %s694 = sld [smem:[#allocation2]]
      %v695 = vstv %s694
      %v696 = vadd.f32 %v692, %v695
      %v697 = vadd.f32 %v693, %v695
      %698 = vst [vmem:[%s310] sm:$0xff] %v696
      %699 = vst [vmem:[%s310 + $0x8] sm:$0xff] %v697
      %s700 = smul.u32 2, %s23
      %p701 = scmp.lt.s32.totalorder %s22, 1
      %s702 = scalar_select %p701, %s22, 1
      %p703 = scmp.lt.s32.totalorder %s700, 1
      %s704 = scalar_select %p703, %s700, 1
      %s705 = smul.addr %s702, 2
      %s706 = sadd.s32 %s704, %s705
      %s707 = smul.addr %s706, 8
      %s708 = scalar_lea.vmem %s6, %s707
      // Predicated region
      $region45: #{biaffine_parser_forward.4} parent=43 // pred_check
        %p709 = pneg %p188
      $region46: #{biaffine_parser_forward.4} parent=43 // pred_check_branch
        %711 = sbr.rel (%p709) target = $region48
      $region47: #{biaffine_parser_forward.4} parent=43 // pred_region
        %s712 = smul.u32 2, %s23
      $region48: #{biaffine_parser_forward.4} parent=43 // pred_fallthru
        _
    $region44: #{biaffine_parser_forward.4} parent=5 // pred_fallthru
      _
    %p713 = scmp.le.s32.totalorder 2, %s13
    // Predicated region
    $region49: #{biaffine_parser_forward.4} parent=5 // pred_check
      %p714 = pneg %p713
    $region50: #{biaffine_parser_forward.4} parent=5 // pred_check_branch
      %716 = sbr.rel (%p714) target = $region52
    $region51: #{biaffine_parser_forward.4} parent=5 // pred_region
      %s717 = ssub.s32 %s13, 2
      // Predicated region
      $region53: #{biaffine_parser_forward.4} parent=51 // pred_check
        %p718 = pneg %p194
      $region54: #{biaffine_parser_forward.4} parent=51 // pred_check_branch
        %720 = sbr.rel (%p718) target = $region56
      $region55: #{biaffine_parser_forward.4} parent=51 // pred_region
        %s721 = smul.u32 2, %s25
        %p722 = scmp.lt.s32.totalorder %s24, 1
        %s723 = scalar_select %p722, %s24, 1
        %p724 = scmp.lt.s32.totalorder %s721, 1
        %s725 = scalar_select %p724, %s721, 1
        %s726 = smul.addr %s723, 2
        %s727 = sadd.s32 %s725, %s726
        %s728 = smul.addr %s727, 8
        %s729 = scalar_lea.vmem %s6, %s728
      $region56: #{biaffine_parser_forward.4} parent=51 // pred_fallthru
        _
    $region52: #{biaffine_parser_forward.4} parent=5 // pred_fallthru
      _
  $region6: #{biaffine_parser_forward.4} parent=0 // loop_footer
    %s17 = sadd.s32 1, %s13
  $region7: #{biaffine_parser_forward.4} parent=0 // loop_footer_branch
    %12 = sbr.rel target = $region3
  $region8: #{biaffine_parser_forward.4} parent=0 // loop_exit
    _

// kernel: biaffine_parser_forward.5
$region0: #{biaffine_parser_forward.5}
  #allocation0 [shape = 'u32[]', space=smem, size = 0x4, offset = 0x4, fixed_abs, tag = 'smem constant byte address 0x4 - core index']
  #allocation1 [shape = 'u32[144,128]{1,0:T(1,128)}', space=vmem, size = 0x12000, scoped, tag = 'internal scratch']
  %s0 = inlined_call_operand.vmem [shape: bf16[2,2,9,128], index: 0, kind: input, shape index: {}]
  %s1 = inlined_call_operand.vmem [shape: bf16[2,9,128], index: 1, kind: input, shape index: {}]
  %s2 = inlined_call_operand.vmem [shape: bf16[128,1024], index: 2, kind: input, shape index: {}]
  %s3 = inlined_call_operand.vmem [shape: bf16[128,128], index: 3, kind: input, shape index: {}]
  %s4 = inlined_call_operand.vmem [shape: bf16[128,128], index: 4, kind: input, shape index: {}]
  %s5 = inlined_call_operand.vmem [shape: f32[1,128], index: 5, kind: input, shape index: {}]
  %s6 = inlined_call_operand.vmem [shape: f32[2,2,9,128], index: 6, kind: output, shape index: {}]
  %s7 = sld [smem:[#allocation0]]
  $region57: #{biaffine_parser_forward.5} parent=0
    _
  %s9 = ssub.s32 1, %s7
  %s10 = scalar_select 0, %s9, %s7
  loop: start=0, step=1, limit=4
  $region2: #{biaffine_parser_forward.5} parent=0 // loop_pre_header
    _
  $region3: #{biaffine_parser_forward.5} parent=0 // loop_header
    %s12 = sphi 0, %s16
    %p13 = scmp.ge.s32.totalorder %s12, 4
    %s22 = sphi 0, %s24
    %s25 = sphi 0, %s22
    %s26 = sphi 0, %s25
    %s42 = sphi 0, %s26
    %s48 = sphi 0, %s50
    %s51 = sphi 0, %s48
    %s52 = sphi 0, %s51
    %s68 = sphi 0, %s52
    %s72 = sphi 0, %s72
    %s74 = sphi 0, %s72
    %s75 = sphi 0, %s74
    %s89 = sphi 0, %s75
    %s93 = sphi 0, %s93
    %s95 = sphi 0, %s93
    %s96 = sphi 0, %s95
    %s110 = sphi 0, %s96
    %s114 = sphi 0, %s114
    %s116 = sphi 0, %s114
    %s117 = sphi 0, %s116
    %s131 = sphi 0, %s117
    %s135 = sphi 0, %s135
    %s137 = sphi 0, %s135
    %s138 = sphi 0, %s137
    %s152 = sphi 0, %s138
    %s158 = sphi 0, %s160
    %s161 = sphi 0, %s158
    %s162 = sphi 0, %s161
    %s178 = sphi 0, %s162
  $region4: #{biaffine_parser_forward.5} parent=0 // loop_header_branch
    %15 = sbr.rel (%p13) target = $region8
  $region5: #{biaffine_parser_forward.5} parent=0 // loop_body
    %s17 = ssub.s32 %s12, 1
    %s18 = ssub.s32 %s12, 2
    %s19 = sadd.s32 %s12, 1
    %s20 = ssub.s32 %s12, %s19
    %p21 = scmp.eq.s32.totalorder %s20, 0
    %s23 = sadd.s32 %s22, 1
    %s24 = scalar_select %p21, %s22, %s23
    %p27 = pneg %p21
    %p28 = scmp.eq.s32.totalorder %s12, 1
    %p29 = por %p27, %p28
    %p30 = scmp.ne.s32.totalorder %s22, %s25
    %p31 = scmp.eq.s32.totalorder %s12, 0
    %p32 = por %p30, %p31
    %p33 = scmp.ne.s32.totalorder %s22, %s25
    %p34 = scmp.eq.s32.totalorder %s17, 1
    %p35 = por %p33, %p34
    %p36 = scmp.ne.s32.totalorder %s25, %s26
    %p37 = scmp.eq.s32.totalorder %s17, 0
    %p38 = por %p36, %p37
    %p39 = scmp.ne.s32.totalorder %s25, %s26
    %p40 = scmp.eq.s32.totalorder %s18, 1
    %p41 = por %p39, %p40
    %p43 = scmp.ne.s32.totalorder %s26, %s42
    %p44 = scmp.eq.s32.totalorder %s18, 0
    %p45 = por %p43, %p44
    %s46 = ssub.s32 %s12, %s19
    %p47 = scmp.eq.s32.totalorder %s46, 0
    %s49 = sadd.s32 %s48, 1
    %s50 = scalar_select %p47, %s48, %s49
    %p53 = pneg %p47
    %p54 = scmp.eq.s32.totalorder %s12, 1
    %p55 = por %p53, %p54
    %p56 = scmp.ne.s32.totalorder %s48, %s51
    %p57 = scmp.eq.s32.totalorder %s12, 0
    %p58 = por %p56, %p57
    %p59 = scmp.ne.s32.totalorder %s48, %s51
    %p60 = scmp.eq.s32.totalorder %s17, 1
    %p61 = por %p59, %p60
    %p62 = scmp.ne.s32.totalorder %s51, %s52
    %p63 = scmp.eq.s32.totalorder %s17, 0
    %p64 = por %p62, %p63
    %p65 = scmp.ne.s32.totalorder %s51, %s52
    %p66 = scmp.eq.s32.totalorder %s18, 1
    %p67 = por %p65, %p66
    %p69 = scmp.ne.s32.totalorder %s52, %s68
    %p70 = scmp.eq.s32.totalorder %s18, 0
    %p71 = por %p69, %p70
    %s73 = sadd.s32 %s72, 1
    %p76 = scmp.eq.s32.totalorder %s12, 1
    %p77 = scmp.ne.s32.totalorder %s72, %s74
    %p78 = scmp.eq.s32.totalorder %s12, 0
    %p79 = por %p77, %p78
    %p80 = scmp.ne.s32.totalorder %s72, %s74
    %p81 = scmp.eq.s32.totalorder %s17, 1
    %p82 = por %p80, %p81
    %p83 = scmp.ne.s32.totalorder %s74, %s75
    %p84 = scmp.eq.s32.totalorder %s17, 0
    %p85 = por %p83, %p84
    %p86 = scmp.ne.s32.totalorder %s74, %s75
    %p87 = scmp.eq.s32.totalorder %s18, 1
    %p88 = por %p86, %p87
    %p90 = scmp.ne.s32.totalorder %s75, %s89
    %p91 = scmp.eq.s32.totalorder %s18, 0
    %p92 = por %p90, %p91
    %s94 = sadd.s32 %s93, 1
    %p97 = scmp.eq.s32.totalorder %s12, 1
    %p98 = scmp.ne.s32.totalorder %s93, %s95
    %p99 = scmp.eq.s32.totalorder %s12, 0
    %p100 = por %p98, %p99
    %p101 = scmp.ne.s32.totalorder %s93, %s95
    %p102 = scmp.eq.s32.totalorder %s17, 1
    %p103 = por %p101, %p102
    %p104 = scmp.ne.s32.totalorder %s95, %s96
    %p105 = scmp.eq.s32.totalorder %s17, 0
    %p106 = por %p104, %p105
    %p107 = scmp.ne.s32.totalorder %s95, %s96
    %p108 = scmp.eq.s32.totalorder %s18, 1
    %p109 = por %p107, %p108
    %p111 = scmp.ne.s32.totalorder %s96, %s110
    %p112 = scmp.eq.s32.totalorder %s18, 0
    %p113 = por %p111, %p112
    %s115 = sadd.s32 %s114, 1
    %p118 = scmp.eq.s32.totalorder %s12, 1
    %p119 = scmp.ne.s32.totalorder %s114, %s116
    %p120 = scmp.eq.s32.totalorder %s12, 0
    %p121 = por %p119, %p120
    %p122 = scmp.ne.s32.totalorder %s114, %s116
    %p123 = scmp.eq.s32.totalorder %s17, 1
    %p124 = por %p122, %p123
    %p125 = scmp.ne.s32.totalorder %s116, %s117
    %p126 = scmp.eq.s32.totalorder %s17, 0
    %p127 = por %p125, %p126
    %p128 = scmp.ne.s32.totalorder %s116, %s117
    %p129 = scmp.eq.s32.totalorder %s18, 1
    %p130 = por %p128, %p129
    %p132 = scmp.ne.s32.totalorder %s117, %s131
    %p133 = scmp.eq.s32.totalorder %s18, 0
    %p134 = por %p132, %p133
    %s136 = sadd.s32 %s135, 1
    %p139 = scmp.eq.s32.totalorder %s12, 1
    %p140 = scmp.ne.s32.totalorder %s135, %s137
    %p141 = scmp.eq.s32.totalorder %s12, 0
    %p142 = por %p140, %p141
    %p143 = scmp.ne.s32.totalorder %s135, %s137
    %p144 = scmp.eq.s32.totalorder %s17, 1
    %p145 = por %p143, %p144
    %p146 = scmp.ne.s32.totalorder %s137, %s138
    %p147 = scmp.eq.s32.totalorder %s17, 0
    %p148 = por %p146, %p147
    %p149 = scmp.ne.s32.totalorder %s137, %s138
    %p150 = scmp.eq.s32.totalorder %s18, 1
    %p151 = por %p149, %p150
    %p153 = scmp.ne.s32.totalorder %s138, %s152
    %p154 = scmp.eq.s32.totalorder %s18, 0
    %p155 = por %p153, %p154
    %s156 = ssub.s32 %s12, %s19
    %p157 = scmp.eq.s32.totalorder %s156, 0
    %s159 = sadd.s32 %s158, 1
    %s160 = scalar_select %p157, %s158, %s159
    %p163 = pneg %p157
    %p164 = scmp.eq.s32.totalorder %s12, 1
    %p165 = por %p163, %p164
    %p166 = scmp.ne.s32.totalorder %s158, %s161
    %p167 = scmp.eq.s32.totalorder %s12, 0
    %p168 = por %p166, %p167
    %p169 = scmp.ne.s32.totalorder %s158, %s161
    %p170 = scmp.eq.s32.totalorder %s17, 1
    %p171 = por %p169, %p170
    %p172 = scmp.ne.s32.totalorder %s161, %s162
    %p173 = scmp.eq.s32.totalorder %s17, 0
    %p174 = por %p172, %p173
    %p175 = scmp.ne.s32.totalorder %s161, %s162
    %p176 = scmp.eq.s32.totalorder %s18, 1
    %p177 = por %p175, %p176
    %p179 = scmp.ne.s32.totalorder %s162, %s178
    %p180 = scmp.eq.s32.totalorder %s18, 0
    %p181 = por %p179, %p180
    %p182 = scmp.le.s32.totalorder 1, %s12
    %p183 = scmp.lt.s32.totalorder %s12, 3
    %p184 = pnand %p182, %p183
    %p185 = pneg %p184
    // Predicated region
    $region9: #{biaffine_parser_forward.5} parent=5 // pred_check
      _
    $region10: #{biaffine_parser_forward.5} parent=5 // pred_check_branch
      %187 = sbr.rel (%p184) target = $region12
    $region11: #{biaffine_parser_forward.5} parent=5 // pred_region
      %s188 = ssub.s32 %s12, 1
      // Predicated region
      $region13: #{biaffine_parser_forward.5} parent=11 // pred_check
        %p189 = pneg %p85
      $region14: #{biaffine_parser_forward.5} parent=11 // pred_check_branch
        %191 = sbr.rel (%p189) target = $region16
      $region15: #{biaffine_parser_forward.5} parent=11 // pred_region
        _
      $region16: #{biaffine_parser_forward.5} parent=11 // pred_fallthru
        _
      // Predicated region
      $region17: #{biaffine_parser_forward.5} parent=11 // pred_check
        %p192 = pneg %p106
      $region18: #{biaffine_parser_forward.5} parent=11 // pred_check_branch
        %194 = sbr.rel (%p192) target = $region20
      $region19: #{biaffine_parser_forward.5} parent=11 // pred_region
        _
      $region20: #{biaffine_parser_forward.5} parent=11 // pred_fallthru
        _
      // Predicated region
      $region21: #{biaffine_parser_forward.5} parent=11 // pred_check
        %p195 = pneg %p127
      $region22: #{biaffine_parser_forward.5} parent=11 // pred_check_branch
        %197 = sbr.rel (%p195) target = $region24
      $region23: #{biaffine_parser_forward.5} parent=11 // pred_region
        _
      $region24: #{biaffine_parser_forward.5} parent=11 // pred_fallthru
        _
      // Predicated region
      $region25: #{biaffine_parser_forward.5} parent=11 // pred_check
        %p198 = pneg %p148
      $region26: #{biaffine_parser_forward.5} parent=11 // pred_check_branch
        %200 = sbr.rel (%p198) target = $region28
      $region27: #{biaffine_parser_forward.5} parent=11 // pred_region
        _
      $region28: #{biaffine_parser_forward.5} parent=11 // pred_fallthru
        _
    $region12: #{biaffine_parser_forward.5} parent=5 // pred_fallthru
      _
    %p201 = scmp.lt.s32.totalorder %s12, 2
    // Predicated region
    $region29: #{biaffine_parser_forward.5} parent=5 // pred_check
      %p202 = pneg %p201
    $region30: #{biaffine_parser_forward.5} parent=5 // pred_check_branch
      %204 = sbr.rel (%p202) target = $region32
    $region31: #{biaffine_parser_forward.5} parent=5 // pred_region
      // Predicated region
      $region33: #{biaffine_parser_forward.5} parent=31 // pred_check
        %p205 = pneg %p32
      $region34: #{biaffine_parser_forward.5} parent=31 // pred_check_branch
        %207 = sbr.rel (%p205) target = $region36
      $region35: #{biaffine_parser_forward.5} parent=31 // pred_region
        %p208 = scmp.lt.s32.totalorder %s12, 1
        %s209 = scalar_select %p208, %s12, 1
        %s210 = smul.addr %s209, 4
        %s211 = smul.addr %s210, 4
        %s212 = scalar_lea.vmem %s0, %s211
      $region36: #{biaffine_parser_forward.5} parent=31 // pred_fallthru
        _
      // Predicated region
      $region37: #{biaffine_parser_forward.5} parent=31 // pred_check
        %p213 = pneg %p58
      $region38: #{biaffine_parser_forward.5} parent=31 // pred_check_branch
        %215 = sbr.rel (%p213) target = $region40
      $region39: #{biaffine_parser_forward.5} parent=31 // pred_region
        %p216 = scmp.lt.s32.totalorder %s12, 1
        %s217 = scalar_select %p216, %s12, 1
        %s218 = smul.addr %s217, 2
        %s219 = smul.addr %s218, 4
        %s220 = scalar_lea.vmem %s1, %s219
      $region40: #{biaffine_parser_forward.5} parent=31 // pred_fallthru
        _
    $region32: #{biaffine_parser_forward.5} parent=5 // pred_fallthru
      _
    %p221 = scmp.le.s32.totalorder 1, %s12
    %p222 = scmp.lt.s32.totalorder %s12, 3
    %p223 = pnand %p221, %p222
    %p224 = pneg %p223
    // Predicated region
    $region41: #{biaffine_parser_forward.5} parent=5 // pred_check
      _
    $region42: #{biaffine_parser_forward.5} parent=5 // pred_check_branch
      %226 = sbr.rel (%p223) target = $region44
    $region43: #{biaffine_parser_forward.5} parent=5 // pred_region
      %s227 = ssub.s32 %s12, 1
      %p228 = scmp.lt.s32.totalorder %s17, 1
      %s229 = scalar_select %p228, %s17, 1
      %s230 = smul.addr %s229, 4
      %s231 = smul.addr %s230, 4
      %s232 = scalar_lea.vmem %s0, %s231
      %p233 = pneg %p38
      %p234 = pneg %p35
      %p235 = scmp.lt.s32.totalorder %s17, 1
      %s236 = scalar_select %p235, %s17, 1
      %s237 = smul.addr %s236, 2
      %s238 = smul.addr %s237, 4
      %s239 = scalar_lea.vmem %s1, %s238
      %p240 = pneg %p64
      %p241 = pneg %p61
      %p242 = pneg %p85
      %p243 = pneg %p82
      %p244 = pneg %p106
      %p245 = pneg %p103
      %p246 = pneg %p127
      %p247 = pneg %p124
      %p248 = pneg %p148
      %p249 = pneg %p145
      %p250 = pneg %p174
      %p251 = pneg %p171
      %p252 = scmp.lt.s32.totalorder %s17, 1
      %s253 = scalar_select %p252, %s17, 1
      %s254 = smul.addr %s253, 4
      %s255 = smul.addr %s254, 8
      %s256 = scalar_lea.vmem %s6, %s255
      %p257 = scmp.lt.s32.totalorder %s17, 1
      %s258 = scalar_select %p257, %s17, 1
      %s259 = smul.addr %s258, 4
      %s260 = smul.addr %s259, 4
      %s261 = scalar_lea.vmem %s0, %s260
      %p262 = scmp.lt.s32.totalorder %s17, 1
      %s263 = scalar_select %p262, %s17, 1
      %s264 = smul.addr %s263, 2
      %s265 = smul.addr %s264, 4
      %s266 = scalar_lea.vmem %s1, %s265
      %p267 = scmp.lt.s32.totalorder %s17, 1
      %s268 = scalar_select %p267, %s17, 1
      %s269 = smul.addr %s268, 4
      %s270 = smul.addr %s269, 8
      %s271 = scalar_lea.vmem %s6, %s270
      %v273 = vld [vmem:[%s266] sm:$0xf]
      %v274 = vld [vmem:[%s266 + $0x4] sm:$0x1]
      %v275 = vld [vmem:[%s2] sm:$0xff]
      %v276 = vld [vmem:[%s2 + $0x8] sm:$0xff]
      %v277 = vld [vmem:[%s2 + $0x10] sm:$0xff]
      %v278 = vld [vmem:[%s2 + $0x18] sm:$0xff]
      %v279 = vld [vmem:[%s2 + $0x20] sm:$0xff]
      %v280 = vld [vmem:[%s2 + $0x28] sm:$0xff]
      %v281 = vld [vmem:[%s2 + $0x30] sm:$0xff]
      %v282 = vld [vmem:[%s2 + $0x38] sm:$0xff]
      %v283 = vld [vmem:[%s2 + $0x40] sm:$0xff]
      %v284 = vld [vmem:[%s2 + $0x48] sm:$0xff]
      %v285 = vld [vmem:[%s2 + $0x50] sm:$0xff]
      %v286 = vld [vmem:[%s2 + $0x58] sm:$0xff]
      %v287 = vld [vmem:[%s2 + $0x60] sm:$0xff]
      %v288 = vld [vmem:[%s2 + $0x68] sm:$0xff]
      %v289 = vld [vmem:[%s2 + $0x70] sm:$0xff]
      %v290 = vld [vmem:[%s2 + $0x78] sm:$0xff]
      %v291 = vld [vmem:[%s2 + $0x80] sm:$0xff]
      %v292 = vld [vmem:[%s2 + $0x88] sm:$0xff]
      %v293 = vld [vmem:[%s2 + $0x90] sm:$0xff]
      %v294 = vld [vmem:[%s2 + $0x98] sm:$0xff]
      %v295 = vld [vmem:[%s2 + $0xa0] sm:$0xff]
      %v296 = vld [vmem:[%s2 + $0xa8] sm:$0xff]
      %v297 = vld [vmem:[%s2 + $0xb0] sm:$0xff]
      %v298 = vld [vmem:[%s2 + $0xb8] sm:$0xff]
      %v299 = vld [vmem:[%s2 + $0xc0] sm:$0xff]
      %v300 = vld [vmem:[%s2 + $0xc8] sm:$0xff]
      %v301 = vld [vmem:[%s2 + $0xd0] sm:$0xff]
      %v302 = vld [vmem:[%s2 + $0xd8] sm:$0xff]
      %v303 = vld [vmem:[%s2 + $0xe0] sm:$0xff]
      %v304 = vld [vmem:[%s2 + $0xe8] sm:$0xff]
      %v305 = vld [vmem:[%s2 + $0xf0] sm:$0xff]
      %v306 = vld [vmem:[%s2 + $0xf8] sm:$0xff]
      %v307 = vld [vmem:[%s2 + $0x100] sm:$0xff]
      %v308 = vld [vmem:[%s2 + $0x108] sm:$0xff]
      %v309 = vld [vmem:[%s2 + $0x110] sm:$0xff]
      %v310 = vld [vmem:[%s2 + $0x118] sm:$0xff]
      %v311 = vld [vmem:[%s2 + $0x120] sm:$0xff]
      %v312 = vld [vmem:[%s2 + $0x128] sm:$0xff]
      %v313 = vld [vmem:[%s2 + $0x130] sm:$0xff]
      %v314 = vld [vmem:[%s2 + $0x138] sm:$0xff]
      %v315 = vld [vmem:[%s2 + $0x140] sm:$0xff]
      %v316 = vld [vmem:[%s2 + $0x148] sm:$0xff]
      %v317 = vld [vmem:[%s2 + $0x150] sm:$0xff]
      %v318 = vld [vmem:[%s2 + $0x158] sm:$0xff]
      %v319 = vld [vmem:[%s2 + $0x160] sm:$0xff]
      %v320 = vld [vmem:[%s2 + $0x168] sm:$0xff]
      %v321 = vld [vmem:[%s2 + $0x170] sm:$0xff]
      %v322 = vld [vmem:[%s2 + $0x178] sm:$0xff]
      %v323 = vld [vmem:[%s2 + $0x180] sm:$0xff]
      %v324 = vld [vmem:[%s2 + $0x188] sm:$0xff]
      %v325 = vld [vmem:[%s2 + $0x190] sm:$0xff]
      %v326 = vld [vmem:[%s2 + $0x198] sm:$0xff]
      %v327 = vld [vmem:[%s2 + $0x1a0] sm:$0xff]
      %v328 = vld [vmem:[%s2 + $0x1a8] sm:$0xff]
      %v329 = vld [vmem:[%s2 + $0x1b0] sm:$0xff]
      %v330 = vld [vmem:[%s2 + $0x1b8] sm:$0xff]
      %v331 = vld [vmem:[%s2 + $0x1c0] sm:$0xff]
      %v332 = vld [vmem:[%s2 + $0x1c8] sm:$0xff]
      %v333 = vld [vmem:[%s2 + $0x1d0] sm:$0xff]
      %v334 = vld [vmem:[%s2 + $0x1d8] sm:$0xff]
      %v335 = vld [vmem:[%s2 + $0x1e0] sm:$0xff]
      %v336 = vld [vmem:[%s2 + $0x1e8] sm:$0xff]
      %v337 = vld [vmem:[%s2 + $0x1f0] sm:$0xff]
      %v338 = vld [vmem:[%s2 + $0x1f8] sm:$0xff]
      %v341 = vunpack.c.l.b16 %v273
      %v342 = vunpack.c.l.b16 %v274
      %v343 = vpack.c.b16 %v342, %v341
      %v409 = vunpack.c.l.b16 %v275
      %v410 = vunpack.c.h.b16 %v275
      %v411 = vunpack.c.l.b16 %v276
      %v412 = vunpack.c.h.b16 %v276
      %v413 = vunpack.c.l.b16 %v277
      %v414 = vunpack.c.h.b16 %v277
      %v415 = vunpack.c.l.b16 %v278
      %v416 = vunpack.c.h.b16 %v278
      %v417 = vunpack.c.l.b16 %v279
      %v418 = vunpack.c.h.b16 %v279
      %v419 = vunpack.c.l.b16 %v280
      %v420 = vunpack.c.h.b16 %v280
      %v421 = vunpack.c.l.b16 %v281
      %v422 = vunpack.c.h.b16 %v281
      %v423 = vunpack.c.l.b16 %v282
      %v424 = vunpack.c.h.b16 %v282
      %v425 = vunpack.c.l.b16 %v283
      %v426 = vunpack.c.h.b16 %v283
      %v427 = vunpack.c.l.b16 %v284
      %v428 = vunpack.c.h.b16 %v284
      %v429 = vunpack.c.l.b16 %v285
      %v430 = vunpack.c.h.b16 %v285
      %v431 = vunpack.c.l.b16 %v286
      %v432 = vunpack.c.h.b16 %v286
      %v433 = vunpack.c.l.b16 %v287
      %v434 = vunpack.c.h.b16 %v287
      %v435 = vunpack.c.l.b16 %v288
      %v436 = vunpack.c.h.b16 %v288
      %v437 = vunpack.c.l.b16 %v289
      %v438 = vunpack.c.h.b16 %v289
      %v439 = vunpack.c.l.b16 %v290
      %v440 = vunpack.c.h.b16 %v290
      %v441 = vunpack.c.l.b16 %v291
      %v442 = vunpack.c.h.b16 %v291
      %v443 = vunpack.c.l.b16 %v292
      %v444 = vunpack.c.h.b16 %v292
      %v445 = vunpack.c.l.b16 %v293
      %v446 = vunpack.c.h.b16 %v293
      %v447 = vunpack.c.l.b16 %v294
      %v448 = vunpack.c.h.b16 %v294
      %v449 = vunpack.c.l.b16 %v295
      %v450 = vunpack.c.h.b16 %v295
      %v451 = vunpack.c.l.b16 %v296
      %v452 = vunpack.c.h.b16 %v296
      %v453 = vunpack.c.l.b16 %v297
      %v454 = vunpack.c.h.b16 %v297
      %v455 = vunpack.c.l.b16 %v298
      %v456 = vunpack.c.h.b16 %v298
      %v457 = vunpack.c.l.b16 %v299
      %v458 = vunpack.c.h.b16 %v299
      %v459 = vunpack.c.l.b16 %v300
      %v460 = vunpack.c.h.b16 %v300
      %v461 = vunpack.c.l.b16 %v301
      %v462 = vunpack.c.h.b16 %v301
      %v463 = vunpack.c.l.b16 %v302
      %v464 = vunpack.c.h.b16 %v302
      %v465 = vunpack.c.l.b16 %v303
      %v466 = vunpack.c.h.b16 %v303
      %v467 = vunpack.c.l.b16 %v304
      %v468 = vunpack.c.h.b16 %v304
      %v469 = vunpack.c.l.b16 %v305
      %v470 = vunpack.c.h.b16 %v305
      %v471 = vunpack.c.l.b16 %v306
      %v472 = vunpack.c.h.b16 %v306
      %v473 = vunpack.c.l.b16 %v307
      %v474 = vunpack.c.h.b16 %v307
      %v475 = vunpack.c.l.b16 %v308
      %v476 = vunpack.c.h.b16 %v308
      %v477 = vunpack.c.l.b16 %v309
      %v478 = vunpack.c.h.b16 %v309
      %v479 = vunpack.c.l.b16 %v310
      %v480 = vunpack.c.h.b16 %v310
      %v481 = vunpack.c.l.b16 %v311
      %v482 = vunpack.c.h.b16 %v311
      %v483 = vunpack.c.l.b16 %v312
      %v484 = vunpack.c.h.b16 %v312
      %v485 = vunpack.c.l.b16 %v313
      %v486 = vunpack.c.h.b16 %v313
      %v487 = vunpack.c.l.b16 %v314
      %v488 = vunpack.c.h.b16 %v314
      %v489 = vunpack.c.l.b16 %v315
      %v490 = vunpack.c.h.b16 %v315
      %v491 = vunpack.c.l.b16 %v316
      %v492 = vunpack.c.h.b16 %v316
      %v493 = vunpack.c.l.b16 %v317
      %v494 = vunpack.c.h.b16 %v317
      %v495 = vunpack.c.l.b16 %v318
      %v496 = vunpack.c.h.b16 %v318
      %v497 = vunpack.c.l.b16 %v319
      %v498 = vunpack.c.h.b16 %v319
      %v499 = vunpack.c.l.b16 %v320
      %v500 = vunpack.c.h.b16 %v320
      %v501 = vunpack.c.l.b16 %v321
      %v502 = vunpack.c.h.b16 %v321
      %v503 = vunpack.c.l.b16 %v322
      %v504 = vunpack.c.h.b16 %v322
      %v505 = vunpack.c.l.b16 %v323
      %v506 = vunpack.c.h.b16 %v323
      %v507 = vunpack.c.l.b16 %v324
      %v508 = vunpack.c.h.b16 %v324
      %v509 = vunpack.c.l.b16 %v325
      %v510 = vunpack.c.h.b16 %v325
      %v511 = vunpack.c.l.b16 %v326
      %v512 = vunpack.c.h.b16 %v326
      %v513 = vunpack.c.l.b16 %v327
      %v514 = vunpack.c.h.b16 %v327
      %v515 = vunpack.c.l.b16 %v328
      %v516 = vunpack.c.h.b16 %v328
      %v517 = vunpack.c.l.b16 %v329
      %v518 = vunpack.c.h.b16 %v329
      %v519 = vunpack.c.l.b16 %v330
      %v520 = vunpack.c.h.b16 %v330
      %v521 = vunpack.c.l.b16 %v331
      %v522 = vunpack.c.h.b16 %v331
      %v523 = vunpack.c.l.b16 %v332
      %v524 = vunpack.c.h.b16 %v332
      %v525 = vunpack.c.l.b16 %v333
      %v526 = vunpack.c.h.b16 %v333
      %v527 = vunpack.c.l.b16 %v334
      %v528 = vunpack.c.h.b16 %v334
      %v529 = vunpack.c.l.b16 %v335
      %v530 = vunpack.c.h.b16 %v335
      %v531 = vunpack.c.l.b16 %v336
      %v532 = vunpack.c.h.b16 %v336
      %v533 = vunpack.c.l.b16 %v337
      %v534 = vunpack.c.h.b16 %v337
      %v535 = vunpack.c.l.b16 %v338
      %v536 = vunpack.c.h.b16 %v338
      %v537 = vpack.c.b16 %v417, %v409
      %v538 = vpack.c.b16 %v418, %v410
      %v539 = vpack.c.b16 %v419, %v411
      %v540 = vpack.c.b16 %v420, %v412
      %v541 = vpack.c.b16 %v421, %v413
      %v542 = vpack.c.b16 %v422, %v414
      %v543 = vpack.c.b16 %v423, %v415
      %v544 = vpack.c.b16 %v424, %v416
      %v545 = vpack.c.b16 %v433, %v425
      %v546 = vpack.c.b16 %v434, %v426
      %v547 = vpack.c.b16 %v435, %v427
      %v548 = vpack.c.b16 %v436, %v428
      %v549 = vpack.c.b16 %v437, %v429
      %v550 = vpack.c.b16 %v438, %v430
      %v551 = vpack.c.b16 %v439, %v431
      %v552 = vpack.c.b16 %v440, %v432
      %v553 = vpack.c.b16 %v449, %v441
      %v554 = vpack.c.b16 %v450, %v442
      %v555 = vpack.c.b16 %v451, %v443
      %v556 = vpack.c.b16 %v452, %v444
      %v557 = vpack.c.b16 %v453, %v445
      %v558 = vpack.c.b16 %v454, %v446
      %v559 = vpack.c.b16 %v455, %v447
      %v560 = vpack.c.b16 %v456, %v448
      %v561 = vpack.c.b16 %v465, %v457
      %v562 = vpack.c.b16 %v466, %v458
      %v563 = vpack.c.b16 %v467, %v459
      %v564 = vpack.c.b16 %v468, %v460
      %v565 = vpack.c.b16 %v469, %v461
      %v566 = vpack.c.b16 %v470, %v462
      %v567 = vpack.c.b16 %v471, %v463
      %v568 = vpack.c.b16 %v472, %v464
      %v569 = vpack.c.b16 %v481, %v473
      %v570 = vpack.c.b16 %v482, %v474
      %v571 = vpack.c.b16 %v483, %v475
      %v572 = vpack.c.b16 %v484, %v476
      %v573 = vpack.c.b16 %v485, %v477
      %v574 = vpack.c.b16 %v486, %v478
      %v575 = vpack.c.b16 %v487, %v479
      %v576 = vpack.c.b16 %v488, %v480
      %v577 = vpack.c.b16 %v497, %v489
      %v578 = vpack.c.b16 %v498, %v490
      %v579 = vpack.c.b16 %v499, %v491
      %v580 = vpack.c.b16 %v500, %v492
      %v581 = vpack.c.b16 %v501, %v493
      %v582 = vpack.c.b16 %v502, %v494
      %v583 = vpack.c.b16 %v503, %v495
      %v584 = vpack.c.b16 %v504, %v496
      %v585 = vpack.c.b16 %v513, %v505
      %v586 = vpack.c.b16 %v514, %v506
      %v587 = vpack.c.b16 %v515, %v507
      %v588 = vpack.c.b16 %v516, %v508
      %v589 = vpack.c.b16 %v517, %v509
      %v590 = vpack.c.b16 %v518, %v510
      %v591 = vpack.c.b16 %v519, %v511
      %v592 = vpack.c.b16 %v520, %v512
      %v593 = vpack.c.b16 %v529, %v521
      %v594 = vpack.c.b16 %v530, %v522
      %v595 = vpack.c.b16 %v531, %v523
      %v596 = vpack.c.b16 %v532, %v524
      %v597 = vpack.c.b16 %v533, %v525
      %v598 = vpack.c.b16 %v534, %v526
      %v599 = vpack.c.b16 %v535, %v527
      %v600 = vpack.c.b16 %v536, %v528
      %665 = vmatprep.subr.bf16.mxu0 %v538
      %666 = vmatpush1.bf16.msra.mxu0 %v537
      %667 = vmatprep.subr.bf16.mxu0 %v546
      %668 = vmatpush1.bf16.msra.mxu0 %v545
      %669 = vmatprep.subr.bf16.mxu0 %v554
      %670 = vmatpush1.bf16.msra.mxu0 %v553
      %671 = vmatprep.subr.bf16.mxu0 %v562
      %672 = vmatpush1.bf16.msra.mxu0 %v561
      %673 = vmatprep.subr.bf16.mxu0 %v570
      %674 = vmatpush1.bf16.msra.mxu0 %v569
      %675 = vmatprep.subr.bf16.mxu0 %v578
      %676 = vmatpush1.bf16.msra.mxu0 %v577
      %677 = vmatprep.subr.bf16.mxu0 %v586
      %678 = vmatpush1.bf16.msra.mxu0 %v585
      %679 = vmatprep.subr.bf16.mxu0 %v594
      %680 = vmatpush1.bf16.msra.mxu0 %v593
      %681 = vmatprep.subr.bf16.mxu0 0
      %682 = vmatpush1.bf16.msra.mxu0 0
      %683 = vmatprep.subr.bf16.mxu0 0
      %684 = vmatpush1.bf16.msra.mxu0 0
      %685 = vmatprep.subr.bf16.mxu0 0
      %686 = vmatpush1.bf16.msra.mxu0 0
      %687 = vmatprep.subr.bf16.mxu0 0
      %688 = vmatpush1.bf16.msra.mxu0 0
      %689 = vmatprep.subr.bf16.mxu0 0
      %690 = vmatpush1.bf16.msra.mxu0 0
      %691 = vmatprep.subr.bf16.mxu0 0
      %692 = vmatpush1.bf16.msra.mxu0 0
      %693 = vmatprep.subr.bf16.mxu0 0
      %694 = vmatpush1.bf16.msra.mxu0 0
      %695 = vmatprep.subr.bf16.mxu0 0
      %696 = vmatpush1.bf16.msra.mxu0 0
      %697 = vmatprep.mubr.bf16.mxu0 0
      %698 = vmatmul.mubr.bf16.gmra.mrb[0].mxu0 %v343
      %v699 = vpop.f32.mrb[0].mxu0
      %v700 = vadd.f32 0.0, %v699
      %v701 = vpop.f32.mrb[0].mxu0
      %v702 = vadd.f32 0.0, %v701
      %v703 = vpop.f32.mrb[0].mxu0
      %v704 = vadd.f32 0.0, %v703
      %v705 = vpop.f32.mrb[0].mxu0
      %v706 = vadd.f32 0.0, %v705
      %707 = vdwg.mxu0
      %708 = vmatprep.subr.bf16.mxu0 %v540
      %709 = vmatpush1.bf16.msra.mxu0 %v539
      %710 = vmatprep.subr.bf16.mxu0 %v548
      %711 = vmatpush1.bf16.msra.mxu0 %v547
      %712 = vmatprep.subr.bf16.mxu0 %v556
      %713 = vmatpush1.bf16.msra.mxu0 %v555
      %714 = vmatprep.subr.bf16.mxu0 %v564
      %715 = vmatpush1.bf16.msra.mxu0 %v563
      %716 = vmatprep.subr.bf16.mxu0 %v572
      %717 = vmatpush1.bf16.msra.mxu0 %v571
      %718 = vmatprep.subr.bf16.mxu0 %v580
      %719 = vmatpush1.bf16.msra.mxu0 %v579
      %720 = vmatprep.subr.bf16.mxu0 %v588
      %721 = vmatpush1.bf16.msra.mxu0 %v587
      %722 = vmatprep.subr.bf16.mxu0 %v596
      %723 = vmatpush1.bf16.msra.mxu0 %v595
      %724 = vmatprep.subr.bf16.mxu0 0
      %725 = vmatpush1.bf16.msra.mxu0 0
      %726 = vmatprep.subr.bf16.mxu0 0
      %727 = vmatpush1.bf16.msra.mxu0 0
      %728 = vmatprep.subr.bf16.mxu0 0
      %729 = vmatpush1.bf16.msra.mxu0 0
      %730 = vmatprep.subr.bf16.mxu0 0
      %731 = vmatpush1.bf16.msra.mxu0 0
      %732 = vmatprep.subr.bf16.mxu0 0
      %733 = vmatpush1.bf16.msra.mxu0 0
      %734 = vmatprep.subr.bf16.mxu0 0
      %735 = vmatpush1.bf16.msra.mxu0 0
      %736 = vmatprep.subr.bf16.mxu0 0
      %737 = vmatpush1.bf16.msra.mxu0 0
      %738 = vmatprep.subr.bf16.mxu0 0
      %739 = vmatpush1.bf16.msra.mxu0 0
      %740 = vmatprep.mubr.bf16.mxu0 0
      %741 = vmatmul.mubr.bf16.gmra.mrb[0].mxu0 %v343
      %v742 = vpop.f32.mrb[0].mxu0
      %v743 = vadd.f32 0.0, %v742
      %v744 = vpop.f32.mrb[0].mxu0
      %v745 = vadd.f32 0.0, %v744
      %v746 = vpop.f32.mrb[0].mxu0
      %v747 = vadd.f32 0.0, %v746
      %v748 = vpop.f32.mrb[0].mxu0
      %v749 = vadd.f32 0.0, %v748
      %750 = vdwg.mxu0
      %751 = vmatprep.subr.bf16.mxu0 %v542
      %752 = vmatpush1.bf16.msra.mxu0 %v541
      %753 = vmatprep.subr.bf16.mxu0 %v550
      %754 = vmatpush1.bf16.msra.mxu0 %v549
      %755 = vmatprep.subr.bf16.mxu0 %v558
      %756 = vmatpush1.bf16.msra.mxu0 %v557
      %757 = vmatprep.subr.bf16.mxu0 %v566
      %758 = vmatpush1.bf16.msra.mxu0 %v565
      %759 = vmatprep.subr.bf16.mxu0 %v574
      %760 = vmatpush1.bf16.msra.mxu0 %v573
      %761 = vmatprep.subr.bf16.mxu0 %v582
      %762 = vmatpush1.bf16.msra.mxu0 %v581
      %763 = vmatprep.subr.bf16.mxu0 %v590
      %764 = vmatpush1.bf16.msra.mxu0 %v589
      %765 = vmatprep.subr.bf16.mxu0 %v598
      %766 = vmatpush1.bf16.msra.mxu0 %v597
      %767 = vmatprep.subr.bf16.mxu0 0
      %768 = vmatpush1.bf16.msra.mxu0 0
      %769 = vmatprep.subr.bf16.mxu0 0
      %770 = vmatpush1.bf16.msra.mxu0 0
      %771 = vmatprep.subr.bf16.mxu0 0
      %772 = vmatpush1.bf16.msra.mxu0 0
      %773 = vmatprep.subr.bf16.mxu0 0
      %774 = vmatpush1.bf16.msra.mxu0 0
      %775 = vmatprep.subr.bf16.mxu0 0
      %776 = vmatpush1.bf16.msra.mxu0 0
      %777 = vmatprep.subr.bf16.mxu0 0
      %778 = vmatpush1.bf16.msra.mxu0 0
      %779 = vmatprep.subr.bf16.mxu0 0
      %780 = vmatpush1.bf16.msra.mxu0 0
      %781 = vmatprep.subr.bf16.mxu0 0
      %782 = vmatpush1.bf16.msra.mxu0 0
      %783 = vmatprep.mubr.bf16.mxu0 0
      %784 = vmatmul.mubr.bf16.gmra.mrb[0].mxu0 %v343
      %v785 = vpop.f32.mrb[0].mxu0
      %v786 = vadd.f32 0.0, %v785
      %v787 = vpop.f32.mrb[0].mxu0
      %v788 = vadd.f32 0.0, %v787
      %v789 = vpop.f32.mrb[0].mxu0
      %v790 = vadd.f32 0.0, %v789
      %v791 = vpop.f32.mrb[0].mxu0
      %v792 = vadd.f32 0.0, %v791
      %793 = vdwg.mxu0
      %794 = vmatprep.subr.bf16.mxu0 %v544
      %795 = vmatpush1.bf16.msra.mxu0 %v543
      %796 = vmatprep.subr.bf16.mxu0 %v552
      %797 = vmatpush1.bf16.msra.mxu0 %v551
      %798 = vmatprep.subr.bf16.mxu0 %v560
      %799 = vmatpush1.bf16.msra.mxu0 %v559
      %800 = vmatprep.subr.bf16.mxu0 %v568
      %801 = vmatpush1.bf16.msra.mxu0 %v567
      %802 = vmatprep.subr.bf16.mxu0 %v576
      %803 = vmatpush1.bf16.msra.mxu0 %v575
      %804 = vmatprep.subr.bf16.mxu0 %v584
      %805 = vmatpush1.bf16.msra.mxu0 %v583
      %806 = vmatprep.subr.bf16.mxu0 %v592
      %807 = vmatpush1.bf16.msra.mxu0 %v591
      %808 = vmatprep.subr.bf16.mxu0 %v600
      %809 = vmatpush1.bf16.msra.mxu0 %v599
      %810 = vmatprep.subr.bf16.mxu0 0
      %811 = vmatpush1.bf16.msra.mxu0 0
      %812 = vmatprep.subr.bf16.mxu0 0
      %813 = vmatpush1.bf16.msra.mxu0 0
      %814 = vmatprep.subr.bf16.mxu0 0
      %815 = vmatpush1.bf16.msra.mxu0 0
      %816 = vmatprep.subr.bf16.mxu0 0
      %817 = vmatpush1.bf16.msra.mxu0 0
      %818 = vmatprep.subr.bf16.mxu0 0
      %819 = vmatpush1.bf16.msra.mxu0 0
      %820 = vmatprep.subr.bf16.mxu0 0
      %821 = vmatpush1.bf16.msra.mxu0 0
      %822 = vmatprep.subr.bf16.mxu0 0
      %823 = vmatpush1.bf16.msra.mxu0 0
      %824 = vmatprep.subr.bf16.mxu0 0
      %825 = vmatpush1.bf16.msra.mxu0 0
      %826 = vmatprep.mubr.bf16.mxu0 0
      %827 = vmatmul.mubr.bf16.gmra.mrb[0].mxu0 %v343
      %v828 = vpop.f32.mrb[0].mxu0
      %v829 = vadd.f32 0.0, %v828
      %v830 = vpop.f32.mrb[0].mxu0
      %v831 = vadd.f32 0.0, %v830
      %v832 = vpop.f32.mrb[0].mxu0
      %v833 = vadd.f32 0.0, %v832
      %v834 = vpop.f32.mrb[0].mxu0
      %v835 = vadd.f32 0.0, %v834
      %836 = vdwg.mxu0
      %v837 = vld [vmem:[%s4] sm:$0xf]
      %v838 = vld [vmem:[%s4 + $0x4] sm:$0xf]
      %v839 = vld [vmem:[%s4 + $0x8] sm:$0xf]
      %v840 = vld [vmem:[%s4 + $0xc] sm:$0xf]
      %v841 = vld [vmem:[%s4 + $0x10] sm:$0xf]
      %v842 = vld [vmem:[%s4 + $0x14] sm:$0xf]
      %v843 = vld [vmem:[%s4 + $0x18] sm:$0xf]
      %v844 = vld [vmem:[%s4 + $0x1c] sm:$0xf]
      %v845 = vld [vmem:[%s4 + $0x20] sm:$0xf]
      %v846 = vld [vmem:[%s4 + $0x24] sm:$0xf]
      %v847 = vld [vmem:[%s4 + $0x28] sm:$0xf]
      %v848 = vld [vmem:[%s4 + $0x2c] sm:$0xf]
      %v849 = vld [vmem:[%s4 + $0x30] sm:$0xf]
      %v850 = vld [vmem:[%s4 + $0x34] sm:$0xf]
      %v851 = vld [vmem:[%s4 + $0x38] sm:$0xf]
      %v852 = vld [vmem:[%s4 + $0x3c] sm:$0xf]
      %v869 = vunpack.c.l.b16 %v837
      %v870 = vunpack.c.l.b16 %v838
      %v871 = vunpack.c.l.b16 %v839
      %v872 = vunpack.c.l.b16 %v840
      %v873 = vunpack.c.l.b16 %v841
      %v874 = vunpack.c.l.b16 %v842
      %v875 = vunpack.c.l.b16 %v843
      %v876 = vunpack.c.l.b16 %v844
      %v877 = vunpack.c.l.b16 %v845
      %v878 = vunpack.c.l.b16 %v846
      %v879 = vunpack.c.l.b16 %v847
      %v880 = vunpack.c.l.b16 %v848
      %v881 = vunpack.c.l.b16 %v849
      %v882 = vunpack.c.l.b16 %v850
      %v883 = vunpack.c.l.b16 %v851
      %v884 = vunpack.c.l.b16 %v852
      %v885 = vpack.c.b16 %v870, %v869
      %v886 = vpack.c.b16 %v872, %v871
      %v887 = vpack.c.b16 %v874, %v873
      %v888 = vpack.c.b16 %v876, %v875
      %v889 = vpack.c.b16 %v878, %v877
      %v890 = vpack.c.b16 %v880, %v879
      %v891 = vpack.c.b16 %v882, %v881
      %v892 = vpack.c.b16 %v884, %v883
      %901 = vmatprep.subr.bf16.mxu0 0
      %902 = vmatpush1.bf16.msra.mxu0 %v885
      %903 = vmatprep.subr.bf16.mxu0 0
      %904 = vmatpush1.bf16.msra.mxu0 %v886
      %905 = vmatprep.subr.bf16.mxu0 0
      %906 = vmatpush1.bf16.msra.mxu0 %v887
      %907 = vmatprep.subr.bf16.mxu0 0
      %908 = vmatpush1.bf16.msra.mxu0 %v888
      %909 = vmatprep.subr.bf16.mxu0 0
      %910 = vmatpush1.bf16.msra.mxu0 %v889
      %911 = vmatprep.subr.bf16.mxu0 0
      %912 = vmatpush1.bf16.msra.mxu0 %v890
      %913 = vmatprep.subr.bf16.mxu0 0
      %914 = vmatpush1.bf16.msra.mxu0 %v891
      %915 = vmatprep.subr.bf16.mxu0 0
      %916 = vmatpush1.bf16.msra.mxu0 %v892
      %917 = vmatprep.subr.bf16.mxu0 0
      %918 = vmatpush1.bf16.msra.mxu0 0
      %919 = vmatprep.subr.bf16.mxu0 0
      %920 = vmatpush1.bf16.msra.mxu0 0
      %921 = vmatprep.subr.bf16.mxu0 0
      %922 = vmatpush1.bf16.msra.mxu0 0
      %923 = vmatprep.subr.bf16.mxu0 0
      %924 = vmatpush1.bf16.msra.mxu0 0
      %925 = vmatprep.subr.bf16.mxu0 0
      %926 = vmatpush1.bf16.msra.mxu0 0
      %927 = vmatprep.subr.bf16.mxu0 0
      %928 = vmatpush1.bf16.msra.mxu0 0
      %929 = vmatprep.subr.bf16.mxu0 0
      %930 = vmatpush1.bf16.msra.mxu0 0
      %931 = vmatprep.subr.bf16.mxu0 0
      %932 = vmatpush1.bf16.msra.mxu0 0
      %933 = vmatprep.mubr.bf16.mxu0 0
      %934 = vmatmul.mubr.bf16.gmra.mrb[0].mxu0 %v343
      %v935 = vpop.f32.mrb[0].mxu0
      %v936 = vadd.f32 0.0, %v935
      %v937 = vpop.f32.mrb[0].mxu0
      %v938 = vpop.f32.mrb[0].mxu0
      %v939 = vadd.f32 0.0, %v938
      %v940 = vpop.f32.mrb[0].mxu0
      %941 = vdwg.mxu0
      %v942 = vld [vmem:[%s261] sm:$0xf]
      %v943 = vld [vmem:[%s261 + $0x4] sm:$0x1]
      %v944 = vunpack.c.l.bf16 %v942
      %v945 = vunpack.c.l.bf16 %v943
      %947 = vset.pattern.permute.xlu0 0
      %948 = vperm.xlu0 %947, %v944
      %v949 = vpop.permute.xlu0 %948
      %952 = vset.pattern.permute.xlu0 0
      %953 = vperm.xlu0 %952, %v945
      %v954 = vpop.permute.xlu0 %953
      %v956 = vmul.f32 %v949, %v700
      %v957 = vmul.f32 %v954, %v704
      %958 = vset.pattern.permute.xlu0 1
      %959 = vperm.xlu0 %958, %v944
      %v960 = vpop.permute.xlu0 %959
      %962 = vset.pattern.permute.xlu0 1
      %963 = vperm.xlu0 %962, %v945
      %v964 = vpop.permute.xlu0 %963
      %v966 = vmul.f32 %v960, %v702
      %v967 = vmul.f32 %v964, %v706
      %v968 = vadd.f32 %v956, %v966
      %v969 = vadd.f32 %v957, %v967
      %970 = vset.pattern.permute.xlu0 2
      %971 = vperm.xlu0 %970, %v944
      %v972 = vpop.permute.xlu0 %971
      %974 = vset.pattern.permute.xlu0 2
      %975 = vperm.xlu0 %974, %v945
      %v976 = vpop.permute.xlu0 %975
      %v978 = vmul.f32 %v972, %v743
      %v979 = vmul.f32 %v976, %v747
      %v980 = vadd.f32 %v968, %v978
      %v981 = vadd.f32 %v969, %v979
      %982 = vset.pattern.permute.xlu0 3
      %983 = vperm.xlu0 %982, %v944
      %v984 = vpop.permute.xlu0 %983
      %986 = vset.pattern.permute.xlu0 3
      %987 = vperm.xlu0 %986, %v945
      %v988 = vpop.permute.xlu0 %987
      %v990 = vmul.f32 %v984, %v745
      %v991 = vmul.f32 %v988, %v749
      %v992 = vadd.f32 %v980, %v990
      %v993 = vadd.f32 %v981, %v991
      %994 = vset.pattern.permute.xlu0 4
      %995 = vperm.xlu0 %994, %v944
      %v996 = vpop.permute.xlu0 %995
      %998 = vset.pattern.permute.xlu0 4
      %999 = vperm.xlu0 %998, %v945
      %v1000 = vpop.permute.xlu0 %999
      %v1002 = vmul.f32 %v996, %v786
      %v1003 = vmul.f32 %v1000, %v790
      %v1004 = vadd.f32 %v992, %v1002
      %v1005 = vadd.f32 %v993, %v1003
      %1006 = vset.pattern.permute.xlu0 5
      %1007 = vperm.xlu0 %1006, %v944
      %v1008 = vpop.permute.xlu0 %1007
      %1010 = vset.pattern.permute.xlu0 5
      %1011 = vperm.xlu0 %1010, %v945
      %v1012 = vpop.permute.xlu0 %1011
      %v1014 = vmul.f32 %v1008, %v788
      %v1015 = vmul.f32 %v1012, %v792
      %v1016 = vadd.f32 %v1004, %v1014
      %v1017 = vadd.f32 %v1005, %v1015
      %1018 = vset.pattern.permute.xlu0 6
      %1019 = vperm.xlu0 %1018, %v944
      %v1020 = vpop.permute.xlu0 %1019
      %1022 = vset.pattern.permute.xlu0 6
      %1023 = vperm.xlu0 %1022, %v945
      %v1024 = vpop.permute.xlu0 %1023
      %v1026 = vmul.f32 %v1020, %v829
      %v1027 = vmul.f32 %v1024, %v833
      %v1028 = vadd.f32 %v1016, %v1026
      %v1029 = vadd.f32 %v1017, %v1027
      %1030 = vset.pattern.permute.xlu0 7
      %1031 = vperm.xlu0 %1030, %v944
      %v1032 = vpop.permute.xlu0 %1031
      %1034 = vset.pattern.permute.xlu0 7
      %1035 = vperm.xlu0 %1034, %v945
      %v1036 = vpop.permute.xlu0 %1035
      %v1038 = vmul.f32 %v1032, %v831
      %v1039 = vmul.f32 %v1036, %v835
      %v1040 = vadd.f32 %v1028, %v1038
      %v1041 = vadd.f32 %v1029, %v1039
      %v1042 = vld [vmem:[%s3] sm:$0xf]
      %v1043 = vld [vmem:[%s3 + $0x4] sm:$0xf]
      %v1044 = vld [vmem:[%s3 + $0x8] sm:$0xf]
      %v1045 = vld [vmem:[%s3 + $0xc] sm:$0xf]
      %v1046 = vld [vmem:[%s3 + $0x10] sm:$0xf]
      %v1047 = vld [vmem:[%s3 + $0x14] sm:$0xf]
      %v1048 = vld [vmem:[%s3 + $0x18] sm:$0xf]
      %v1049 = vld [vmem:[%s3 + $0x1c] sm:$0xf]
      %v1050 = vld [vmem:[%s3 + $0x20] sm:$0xf]
      %v1051 = vld [vmem:[%s3 + $0x24] sm:$0xf]
      %v1052 = vld [vmem:[%s3 + $0x28] sm:$0xf]
      %v1053 = vld [vmem:[%s3 + $0x2c] sm:$0xf]
      %v1054 = vld [vmem:[%s3 + $0x30] sm:$0xf]
      %v1055 = vld [vmem:[%s3 + $0x34] sm:$0xf]
      %v1056 = vld [vmem:[%s3 + $0x38] sm:$0xf]
      %v1057 = vld [vmem:[%s3 + $0x3c] sm:$0xf]
      %v1060 = vunpack.c.l.b16 %v942
      %v1061 = vunpack.c.l.b16 %v943
      %v1062 = vpack.c.b16 %v1061, %v1060
      %v1080 = vunpack.c.l.b16 %v1042
      %v1081 = vunpack.c.l.b16 %v1043
      %v1082 = vunpack.c.l.b16 %v1044
      %v1083 = vunpack.c.l.b16 %v1045
      %v1084 = vunpack.c.l.b16 %v1046
      %v1085 = vunpack.c.l.b16 %v1047
      %v1086 = vunpack.c.l.b16 %v1048
      %v1087 = vunpack.c.l.b16 %v1049
      %v1088 = vunpack.c.l.b16 %v1050
      %v1089 = vunpack.c.l.b16 %v1051
      %v1090 = vunpack.c.l.b16 %v1052
      %v1091 = vunpack.c.l.b16 %v1053
      %v1092 = vunpack.c.l.b16 %v1054
      %v1093 = vunpack.c.l.b16 %v1055
      %v1094 = vunpack.c.l.b16 %v1056
      %v1095 = vunpack.c.l.b16 %v1057
      %v1096 = vpack.c.b16 %v1081, %v1080
      %v1097 = vpack.c.b16 %v1083, %v1082
      %v1098 = vpack.c.b16 %v1085, %v1084
      %v1099 = vpack.c.b16 %v1087, %v1086
      %v1100 = vpack.c.b16 %v1089, %v1088
      %v1101 = vpack.c.b16 %v1091, %v1090
      %v1102 = vpack.c.b16 %v1093, %v1092
      %v1103 = vpack.c.b16 %v1095, %v1094
      %1112 = vmatprep.subr.bf16.mxu0 0
      %1113 = vmatpush1.bf16.msra.mxu0 %v1096
      %1114 = vmatprep.subr.bf16.mxu0 0
      %1115 = vmatpush1.bf16.msra.mxu0 %v1097
      %1116 = vmatprep.subr.bf16.mxu0 0
      %1117 = vmatpush1.bf16.msra.mxu0 %v1098
      %1118 = vmatprep.subr.bf16.mxu0 0
      %1119 = vmatpush1.bf16.msra.mxu0 %v1099
      %1120 = vmatprep.subr.bf16.mxu0 0
      %1121 = vmatpush1.bf16.msra.mxu0 %v1100
      %1122 = vmatprep.subr.bf16.mxu0 0
      %1123 = vmatpush1.bf16.msra.mxu0 %v1101
      %1124 = vmatprep.subr.bf16.mxu0 0
      %1125 = vmatpush1.bf16.msra.mxu0 %v1102
      %1126 = vmatprep.subr.bf16.mxu0 0
      %1127 = vmatpush1.bf16.msra.mxu0 %v1103
      %1128 = vmatprep.subr.bf16.mxu0 0
      %1129 = vmatpush1.bf16.msra.mxu0 0
      %1130 = vmatprep.subr.bf16.mxu0 0
      %1131 = vmatpush1.bf16.msra.mxu0 0
      %1132 = vmatprep.subr.bf16.mxu0 0
      %1133 = vmatpush1.bf16.msra.mxu0 0
      %1134 = vmatprep.subr.bf16.mxu0 0
      %1135 = vmatpush1.bf16.msra.mxu0 0
      %1136 = vmatprep.subr.bf16.mxu0 0
      %1137 = vmatpush1.bf16.msra.mxu0 0
      %1138 = vmatprep.subr.bf16.mxu0 0
      %1139 = vmatpush1.bf16.msra.mxu0 0
      %1140 = vmatprep.subr.bf16.mxu0 0
      %1141 = vmatpush1.bf16.msra.mxu0 0
      %1142 = vmatprep.subr.bf16.mxu0 0
      %1143 = vmatpush1.bf16.msra.mxu0 0
      %1144 = vmatprep.mubr.bf16.mxu0 0
      %1145 = vmatmul.mubr.bf16.gmra.mrb[0].mxu0 %v1062
      %v1146 = vpop.f32.mrb[0].mxu0
      %v1147 = vadd.f32 0.0, %v1146
      %v1148 = vpop.f32.mrb[0].mxu0
      %v1149 = vpop.f32.mrb[0].mxu0
      %v1150 = vadd.f32 0.0, %v1149
      %v1151 = vpop.f32.mrb[0].mxu0
      %1152 = vdwg.mxu0
      %v1153 = vadd.f32 %v1040, %v1147
      %v1154 = vadd.f32 %v1041, %v1150
      %v1155 = vadd.f32 %v1153, %v936
      %v1156 = vadd.f32 %v1154, %v939
      %v1157 = vld [vmem:[%s5] sm:$0x1]
      %v1159 = vlaneseq
      %v1160 = vshrl.u32 %v1159, 7
      %v1161 = vsub.s32 0, %v1160
      %v1162 = vrot.slane %v1157, %v1161
      %v1164 = vadd.f32 %v1155, %v1162
      %v1165 = vadd.f32 %v1156, %v1162
      %1166 = vst [vmem:[%s271] sm:$0xff] %v1164
      %1167 = vst [vmem:[%s271 + $0x8] sm:$0x1] %v1165
      %s1168 = scalar_lea.vmem %s261, 8
      %v1169 = vld [vmem:[%s1168] sm:$0xf]
      %v1170 = vld [vmem:[%s1168 + $0x4] sm:$0x1]
      %v1171 = vunpack.c.l.bf16 %v1169
      %v1172 = vunpack.c.l.bf16 %v1170
      %1174 = vset.pattern.permute.xlu0 0
      %1175 = vperm.xlu0 %1174, %v1171
      %v1176 = vpop.permute.xlu0 %1175
      %1179 = vset.pattern.permute.xlu0 0
      %1180 = vperm.xlu0 %1179, %v1172
      %v1181 = vpop.permute.xlu0 %1180
      %v1183 = vmul.f32 %v1176, %v700
      %v1184 = vmul.f32 %v1181, %v704
      %1185 = vset.pattern.permute.xlu0 1
      %1186 = vperm.xlu0 %1185, %v1171
      %v1187 = vpop.permute.xlu0 %1186
      %1189 = vset.pattern.permute.xlu0 1
      %1190 = vperm.xlu0 %1189, %v1172
      %v1191 = vpop.permute.xlu0 %1190
      %v1193 = vmul.f32 %v1187, %v702
      %v1194 = vmul.f32 %v1191, %v706
      %v1195 = vadd.f32 %v1183, %v1193
      %v1196 = vadd.f32 %v1184, %v1194
      %1197 = vset.pattern.permute.xlu0 2
      %1198 = vperm.xlu0 %1197, %v1171
      %v1199 = vpop.permute.xlu0 %1198
      %1201 = vset.pattern.permute.xlu0 2
      %1202 = vperm.xlu0 %1201, %v1172
      %v1203 = vpop.permute.xlu0 %1202
      %v1205 = vmul.f32 %v1199, %v743
      %v1206 = vmul.f32 %v1203, %v747
      %v1207 = vadd.f32 %v1195, %v1205
      %v1208 = vadd.f32 %v1196, %v1206
      %1209 = vset.pattern.permute.xlu0 3
      %1210 = vperm.xlu0 %1209, %v1171
      %v1211 = vpop.permute.xlu0 %1210
      %1213 = vset.pattern.permute.xlu0 3
      %1214 = vperm.xlu0 %1213, %v1172
      %v1215 = vpop.permute.xlu0 %1214
      %v1217 = vmul.f32 %v1211, %v745
      %v1218 = vmul.f32 %v1215, %v749
      %v1219 = vadd.f32 %v1207, %v1217
      %v1220 = vadd.f32 %v1208, %v1218
      %1221 = vset.pattern.permute.xlu0 4
      %1222 = vperm.xlu0 %1221, %v1171
      %v1223 = vpop.permute.xlu0 %1222
      %1225 = vset.pattern.permute.xlu0 4
      %1226 = vperm.xlu0 %1225, %v1172
      %v1227 = vpop.permute.xlu0 %1226
      %v1229 = vmul.f32 %v1223, %v786
      %v1230 = vmul.f32 %v1227, %v790
      %v1231 = vadd.f32 %v1219, %v1229
      %v1232 = vadd.f32 %v1220, %v1230
      %1233 = vset.pattern.permute.xlu0 5
      %1234 = vperm.xlu0 %1233, %v1171
      %v1235 = vpop.permute.xlu0 %1234
      %1237 = vset.pattern.permute.xlu0 5
      %1238 = vperm.xlu0 %1237, %v1172
      %v1239 = vpop.permute.xlu0 %1238
      %v1241 = vmul.f32 %v1235, %v788
      %v1242 = vmul.f32 %v1239, %v792
      %v1243 = vadd.f32 %v1231, %v1241
      %v1244 = vadd.f32 %v1232, %v1242
      %1245 = vset.pattern.permute.xlu0 6
      %1246 = vperm.xlu0 %1245, %v1171
      %v1247 = vpop.permute.xlu0 %1246
      %1249 = vset.pattern.permute.xlu0 6
      %1250 = vperm.xlu0 %1249, %v1172
      %v1251 = vpop.permute.xlu0 %1250
      %v1253 = vmul.f32 %v1247, %v829
      %v1254 = vmul.f32 %v1251, %v833
      %v1255 = vadd.f32 %v1243, %v1253
      %v1256 = vadd.f32 %v1244, %v1254
      %1257 = vset.pattern.permute.xlu0 7
      %1258 = vperm.xlu0 %1257, %v1171
      %v1259 = vpop.permute.xlu0 %1258
      %1261 = vset.pattern.permute.xlu0 7
      %1262 = vperm.xlu0 %1261, %v1172
      %v1263 = vpop.permute.xlu0 %1262
      %v1265 = vmul.f32 %v1259, %v831
      %v1266 = vmul.f32 %v1263, %v835
      %v1267 = vadd.f32 %v1255, %v1265
      %v1268 = vadd.f32 %v1256, %v1266
      %v1269 = vld [vmem:[%s3] sm:$0xf]
      %v1270 = vld [vmem:[%s3 + $0x4] sm:$0xf]
      %v1271 = vld [vmem:[%s3 + $0x8] sm:$0xf]
      %v1272 = vld [vmem:[%s3 + $0xc] sm:$0xf]
      %v1273 = vld [vmem:[%s3 + $0x10] sm:$0xf]
      %v1274 = vld [vmem:[%s3 + $0x14] sm:$0xf]
      %v1275 = vld [vmem:[%s3 + $0x18] sm:$0xf]
      %v1276 = vld [vmem:[%s3 + $0x1c] sm:$0xf]
      %v1277 = vld [vmem:[%s3 + $0x20] sm:$0xf]
      %v1278 = vld [vmem:[%s3 + $0x24] sm:$0xf]
      %v1279 = vld [vmem:[%s3 + $0x28] sm:$0xf]
      %v1280 = vld [vmem:[%s3 + $0x2c] sm:$0xf]
      %v1281 = vld [vmem:[%s3 + $0x30] sm:$0xf]
      %v1282 = vld [vmem:[%s3 + $0x34] sm:$0xf]
      %v1283 = vld [vmem:[%s3 + $0x38] sm:$0xf]
      %v1284 = vld [vmem:[%s3 + $0x3c] sm:$0xf]
      %v1287 = vunpack.c.l.b16 %v1169
      %v1288 = vunpack.c.l.b16 %v1170
      %v1289 = vpack.c.b16 %v1288, %v1287
      %v1307 = vunpack.c.l.b16 %v1269
      %v1308 = vunpack.c.l.b16 %v1270
      %v1309 = vunpack.c.l.b16 %v1271
      %v1310 = vunpack.c.l.b16 %v1272
      %v1311 = vunpack.c.l.b16 %v1273
      %v1312 = vunpack.c.l.b16 %v1274
      %v1313 = vunpack.c.l.b16 %v1275
      %v1314 = vunpack.c.l.b16 %v1276
      %v1315 = vunpack.c.l.b16 %v1277
      %v1316 = vunpack.c.l.b16 %v1278
      %v1317 = vunpack.c.l.b16 %v1279
      %v1318 = vunpack.c.l.b16 %v1280
      %v1319 = vunpack.c.l.b16 %v1281
      %v1320 = vunpack.c.l.b16 %v1282
      %v1321 = vunpack.c.l.b16 %v1283
      %v1322 = vunpack.c.l.b16 %v1284
      %v1323 = vpack.c.b16 %v1308, %v1307
      %v1324 = vpack.c.b16 %v1310, %v1309
      %v1325 = vpack.c.b16 %v1312, %v1311
      %v1326 = vpack.c.b16 %v1314, %v1313
      %v1327 = vpack.c.b16 %v1316, %v1315
      %v1328 = vpack.c.b16 %v1318, %v1317
      %v1329 = vpack.c.b16 %v1320, %v1319
      %v1330 = vpack.c.b16 %v1322, %v1321
      %1339 = vmatprep.subr.bf16.mxu0 0
      %1340 = vmatpush1.bf16.msra.mxu0 %v1323
      %1341 = vmatprep.subr.bf16.mxu0 0
      %1342 = vmatpush1.bf16.msra.mxu0 %v1324
      %1343 = vmatprep.subr.bf16.mxu0 0
      %1344 = vmatpush1.bf16.msra.mxu0 %v1325
      %1345 = vmatprep.subr.bf16.mxu0 0
      %1346 = vmatpush1.bf16.msra.mxu0 %v1326
      %1347 = vmatprep.subr.bf16.mxu0 0
      %1348 = vmatpush1.bf16.msra.mxu0 %v1327
      %1349 = vmatprep.subr.bf16.mxu0 0
      %1350 = vmatpush1.bf16.msra.mxu0 %v1328
      %1351 = vmatprep.subr.bf16.mxu0 0
      %1352 = vmatpush1.bf16.msra.mxu0 %v1329
      %1353 = vmatprep.subr.bf16.mxu0 0
      %1354 = vmatpush1.bf16.msra.mxu0 %v1330
      %1355 = vmatprep.subr.bf16.mxu0 0
      %1356 = vmatpush1.bf16.msra.mxu0 0
      %1357 = vmatprep.subr.bf16.mxu0 0
      %1358 = vmatpush1.bf16.msra.mxu0 0
      %1359 = vmatprep.subr.bf16.mxu0 0
      %1360 = vmatpush1.bf16.msra.mxu0 0
      %1361 = vmatprep.subr.bf16.mxu0 0
      %1362 = vmatpush1.bf16.msra.mxu0 0
      %1363 = vmatprep.subr.bf16.mxu0 0
      %1364 = vmatpush1.bf16.msra.mxu0 0
      %1365 = vmatprep.subr.bf16.mxu0 0
      %1366 = vmatpush1.bf16.msra.mxu0 0
      %1367 = vmatprep.subr.bf16.mxu0 0
      %1368 = vmatpush1.bf16.msra.mxu0 0
      %1369 = vmatprep.subr.bf16.mxu0 0
      %1370 = vmatpush1.bf16.msra.mxu0 0
      %1371 = vmatprep.mubr.bf16.mxu0 0
      %1372 = vmatmul.mubr.bf16.gmra.mrb[0].mxu0 %v1289
      %v1373 = vpop.f32.mrb[0].mxu0
      %v1374 = vadd.f32 0.0, %v1373
      %v1375 = vpop.f32.mrb[0].mxu0
      %v1376 = vpop.f32.mrb[0].mxu0
      %v1377 = vadd.f32 0.0, %v1376
      %v1378 = vpop.f32.mrb[0].mxu0
      %1379 = vdwg.mxu0
      %v1380 = vadd.f32 %v1267, %v1374
      %v1381 = vadd.f32 %v1268, %v1377
      %v1382 = vadd.f32 %v1380, %v936
      %v1383 = vadd.f32 %v1381, %v939
      %v1384 = vld [vmem:[%s5] sm:$0x1]
      %v1386 = vlaneseq
      %v1387 = vshrl.u32 %v1386, 7
      %v1388 = vsub.s32 0, %v1387
      %v1389 = vrot.slane %v1384, %v1388
      %v1391 = vadd.f32 %v1382, %v1389
      %v1392 = vadd.f32 %v1383, %v1389
      %s1393 = scalar_lea.vmem %s271, 16
      %1394 = vst [vmem:[%s1393] sm:$0xff] %v1391
      %1395 = vst [vmem:[%s1393 + $0x8] sm:$0x1] %v1392
      %p1396 = scmp.lt.s32.totalorder %s17, 1
      %s1397 = scalar_select %p1396, %s17, 1
      %s1398 = smul.addr %s1397, 4
      %s1399 = smul.addr %s1398, 8
      %s1400 = scalar_lea.vmem %s6, %s1399
      // Predicated region
      $region45: #{biaffine_parser_forward.5} parent=43 // pred_check
        %p1401 = pneg %p171
      $region46: #{biaffine_parser_forward.5} parent=43 // pred_check_branch
        %1403 = sbr.rel (%p1401) target = $region48
      $region47: #{biaffine_parser_forward.5} parent=43 // pred_region
        _
      $region48: #{biaffine_parser_forward.5} parent=43 // pred_fallthru
        _
    $region44: #{biaffine_parser_forward.5} parent=5 // pred_fallthru
      _
    %p1404 = scmp.le.s32.totalorder 2, %s12
    // Predicated region
    $region49: #{biaffine_parser_forward.5} parent=5 // pred_check
      %p1405 = pneg %p1404
    $region50: #{biaffine_parser_forward.5} parent=5 // pred_check_branch
      %1407 = sbr.rel (%p1405) target = $region52
    $region51: #{biaffine_parser_forward.5} parent=5 // pred_region
      %s1408 = ssub.s32 %s12, 2
      // Predicated region
      $region53: #{biaffine_parser_forward.5} parent=51 // pred_check
        %p1409 = pneg %p177
      $region54: #{biaffine_parser_forward.5} parent=51 // pred_check_branch
        %1411 = sbr.rel (%p1409) target = $region56
      $region55: #{biaffine_parser_forward.5} parent=51 // pred_region
        %p1412 = scmp.lt.s32.totalorder %s18, 1
        %s1413 = scalar_select %p1412, %s18, 1
        %s1414 = smul.addr %s1413, 4
        %s1415 = smul.addr %s1414, 8
        %s1416 = scalar_lea.vmem %s6, %s1415
      $region56: #{biaffine_parser_forward.5} parent=51 // pred_fallthru
        _
    $region52: #{biaffine_parser_forward.5} parent=5 // pred_fallthru
      _
  $region6: #{biaffine_parser_forward.5} parent=0 // loop_footer
    %s16 = sadd.s32 1, %s12
  $region7: #{biaffine_parser_forward.5} parent=0 // loop_footer_branch
    %11 = sbr.rel target = $region3
  $region8: #{biaffine_parser_forward.5} parent=0 // loop_exit
    _

</llo_original>
